<compile_context>
chip_gen: v7x
topology: tpu7x:2x2x1
jax: 0.10.0
libtpu: 0.0.40
codegen_flags: <defaults>
</compile_context>

<pallas_src>
import jax
import jax.numpy as jnp
from jax.experimental import pallas as pl
from jax.experimental.pallas import tpu as pltpu


def gru_kernel(x_ref, h0_ref, wih_ref, whh_ref, bfold_ref, bhn_ref,
               out_ref, gi_scratch):
    T, B, D = x_ref.shape
    H = h0_ref.shape[-1]

    # ---- Phase 1: hoisted input projection (no sequential dependence). ----
    # One (T*B, D) x (D, 3H) matmul, bf16 inputs, f32 accumulation; folded
    # input-side (+ r/z hidden-side) biases added once over the whole buffer.
    x_all = x_ref[...].reshape(T * B, D)                       # bf16
    gi_all = jnp.dot(x_all, wih_ref[...],
                     preferred_element_type=jnp.float32)       # (T*B, 3H) f32
    gi_all = gi_all + bfold_ref[...]                           # broadcast once
    gi_scratch[...] = gi_all.reshape(T, B, 3 * H)              # VMEM-resident

    # ---- Phase 2: sequential recurrence over T inside this invocation. ----
    whh = whh_ref[...]                                         # (H, 3H) bf16, resident
    b_hn = jnp.broadcast_to(bhn_ref[...], (B, H))              # hoisted broadcast

    def step(t, h):                                            # h: (B, H) f32
        gi = gi_scratch[t]                                     # (B, 3H) f32
        gh = jnp.dot(h.astype(jnp.bfloat16), whh,
                     preferred_element_type=jnp.float32)       # (B, 3H) f32
        i_r, i_z, i_n = gi[:, :H], gi[:, H:2 * H], gi[:, 2 * H:]
        h_r, h_z, h_n = gh[:, :H], gh[:, H:2 * H], gh[:, 2 * H:]
        r = jax.nn.sigmoid(i_r + h_r)
        z = jax.nn.sigmoid(i_z + h_z)
        n = jnp.tanh(i_n + r * (h_n + b_hn))                   # PyTorch: b_hn inside r*(...)
        return (1.0 - z) * n + z * h

    h_last = jax.lax.fori_loop(0, T, step, h0_ref[...], unroll=True)

    out_ref[...] = jnp.maximum(h_last, 0.0)                    # ReLU on last hidden


def gru_forward(x_btd, h0_bh, w_ih, w_hh, b_ih, b_hh):
    """x_btd: (B, T, D_in) batch-first (PyTorch convention). Returns (B, H) f32."""
    B, T, D = x_btd.shape
    H = h0_bh.shape[-1]

    # Time-major layout + bf16 matmul operands (f32 accumulation in-kernel).
    x_tbd = jnp.transpose(x_btd, (1, 0, 2)).astype(jnp.bfloat16)   # (T, B, D)
    wih_t = w_ih.T.astype(jnp.bfloat16)                            # (D, 3H)
    whh_t = w_hh.T.astype(jnp.bfloat16)                            # (H, 3H)

    # Bias folding (PyTorch gate order [r, z, n]):
    #   r/z gates: b_ih + b_hh can be summed and added to gi once.
    #   n gate   : only b_in goes into gi; b_hn must stay inside r*(h_n + b_hn).
    b_fold = jnp.concatenate(
        [b_ih[:2 * H] + b_hh[:2 * H], b_ih[2 * H:]]).reshape(1, 3 * H)
    b_hn = b_hh[2 * H:].reshape(1, H)

    vmem_specs = [pl.BlockSpec(memory_space=pltpu.MemorySpace.VMEM)
                  for _ in range(6)]

    return pl.pallas_call(
        gru_kernel,
        out_shape=jax.ShapeDtypeStruct((B, H), jnp.float32),
        in_specs=vmem_specs,
        out_specs=pl.BlockSpec(memory_space=pltpu.MemorySpace.VMEM),
        scratch_shapes=[pltpu.VMEM((T, B, 3 * H), jnp.float32)],   # hoisted gi buffer
        compiler_params=pltpu.CompilerParams(
            # Tiny footprint at these shapes; explicit budget keeps this safe on
            # v7x's 64 MiB physical VMEM when scaled to production sizes.
            vmem_limit_bytes=32 * 1024 * 1024),
    )(x_tbd, h0_bh.astype(jnp.float32), wih_t, whh_t,
      b_fold.astype(jnp.float32), b_hn.astype(jnp.float32))


def gru_reference(x_btd, h0_bh, w_ih, w_hh, b_ih, b_hh):
    """Pure-JAX reference (PyTorch GRU equations, gate order [r, z, n]).

    Uses the same bf16-operand / f32-accumulate matmul numerics as the kernel
    so it is a tight oracle for the kernel mechanics.
    """
    H = h0_bh.shape[-1]
    wih_t = w_ih.T.astype(jnp.bfloat16)
    whh_t = w_hh.T.astype(jnp.bfloat16)

    def step(h, x_t):
        gi = jnp.dot(x_t.astype(jnp.bfloat16), wih_t,
                     preferred_element_type=jnp.float32) + b_ih
        gh = jnp.dot(h.astype(jnp.bfloat16), whh_t,
                     preferred_element_type=jnp.float32) + b_hh
        i_r, i_z, i_n = gi[:, :H], gi[:, H:2 * H], gi[:, 2 * H:]
        h_r, h_z, h_n = gh[:, :H], gh[:, H:2 * H], gh[:, 2 * H:]
        r = jax.nn.sigmoid(i_r + h_r)
        z = jax.nn.sigmoid(i_z + h_z)
        n = jnp.tanh(i_n + r * h_n)          # h_n already contains b_hn here
        h_new = (1.0 - z) * n + z * h
        return h_new, None

    h_last, _ = jax.lax.scan(step, h0_bh, jnp.transpose(x_btd, (1, 0, 2)))
    return jnp.maximum(h_last, 0.0)


if __name__ == "__main__":
    # Small shapes consistent with the module (scaled down from 768/512).
    B, T, D_in, H = 8, 8, 128, 128

    key = jax.random.PRNGKey(0)
    kx, kh, k1, k2, k3, k4 = jax.random.split(key, 6)

    x = jax.random.normal(kx, (B, T, D_in), dtype=jnp.float32)
    h0 = jax.random.normal(kh, (B, H), dtype=jnp.float32)   # num_layers=1 squeezed

    # Deterministic parameter init, PyTorch-style uniform(-1/sqrt(H), 1/sqrt(H)).
    bound = 1.0 / jnp.sqrt(jnp.float32(H))
    w_ih = jax.random.uniform(k1, (3 * H, D_in), jnp.float32, -bound, bound)
    w_hh = jax.random.uniform(k2, (3 * H, H), jnp.float32, -bound, bound)
    b_ih = jax.random.uniform(k3, (3 * H,), jnp.float32, -bound, bound)
    b_hh = jax.random.uniform(k4, (3 * H,), jnp.float32, -bound, bound)

    out = gru_forward(x, h0, w_ih, w_hh, b_ih, b_hh)
    out = jax.block_until_ready(out)

    ref = gru_reference(x, h0, w_ih, w_hh, b_ih, b_hh)
    assert out.shape == (B, H)
    assert jnp.allclose(out, ref, atol=1e-3, rtol=1e-3), "mismatch vs JAX reference"

    print("KERNEL_OK")
</pallas_src>

<mosaic_0001>
module attributes {stable_mosaic.version = 11 : i64} {
  func.func @gru_kernel(%arg0: memref<8x8x128xbf16, #tpu.memory_space<vmem>>, %arg1: memref<8x128xf32, #tpu.memory_space<vmem>>, %arg2: memref<128x384xbf16, #tpu.memory_space<vmem>>, %arg3: memref<128x384xbf16, #tpu.memory_space<vmem>>, %arg4: memref<1x384xf32, #tpu.memory_space<vmem>>, %arg5: memref<1x128xf32, #tpu.memory_space<vmem>>, %arg6: memref<8x128xf32, #tpu.memory_space<vmem>>, %arg7: memref<8x8x384xf32, #tpu.memory_space<vmem>>) attributes {dimension_semantics = [], scalar_prefetch = 0 : i64, scratch_operands = 1 : i64, tpu.core_type = #tpu.core_type<tc>} {
    %c0 = arith.constant 0 : index
    %c0_0 = arith.constant 0 : index
    %c0_1 = arith.constant 0 : index
    %0 = vector.load %arg0[%c0, %c0_0, %c0_1] : memref<8x8x128xbf16, #tpu.memory_space<vmem>>, vector<8x8x128xbf16>
    %1 = vector.shape_cast %0 : vector<8x8x128xbf16> to vector<64x128xbf16>
    %c0_2 = arith.constant 0 : index
    %c0_3 = arith.constant 0 : index
    %2 = vector.load %arg2[%c0_2, %c0_3] : memref<128x384xbf16, #tpu.memory_space<vmem>>, vector<128x384xbf16>
    %cst = arith.constant dense<0.000000e+00> : vector<64x384xf32>
    %3 = tpu.matmul %1, %2, %cst {dimension_numbers = #tpu.dot_dimension_numbers<[1], [0], [0], [1], [0, 0, 1, 1], [], []>} : vector<64x128xbf16>, vector<128x384xbf16>, vector<64x384xf32> -> vector<64x384xf32>
    %c0_4 = arith.constant 0 : index
    %c0_5 = arith.constant 0 : index
    %4 = vector.load %arg4[%c0_4, %c0_5] : memref<1x384xf32, #tpu.memory_space<vmem>>, vector<1x384xf32>
    %5 = vector.broadcast %4 : vector<1x384xf32> to vector<64x384xf32>
    %6 = arith.addf %3, %5 : vector<64x384xf32>
    %7 = vector.shape_cast %6 : vector<64x384xf32> to vector<8x8x384xf32>
    %c0_6 = arith.constant 0 : index
    %c0_7 = arith.constant 0 : index
    %c0_8 = arith.constant 0 : index
    %8 = vector.load %arg7[%c0_6, %c0_7, %c0_8] : memref<8x8x384xf32, #tpu.memory_space<vmem>>, vector<8x8x384xf32>
    tpu.vector_store %arg7[%c0_6, %c0_7, %c0_8], %7 {strides = array<i32>} : memref<8x8x384xf32, #tpu.memory_space<vmem>>, vector<8x8x384xf32>,
    %c0_9 = arith.constant 0 : index
    %c0_10 = arith.constant 0 : index
    %9 = vector.load %arg3[%c0_9, %c0_10] : memref<128x384xbf16, #tpu.memory_space<vmem>>, vector<128x384xbf16>
    %c0_11 = arith.constant 0 : index
    %c0_12 = arith.constant 0 : index
    %10 = vector.load %arg5[%c0_11, %c0_12] : memref<1x128xf32, #tpu.memory_space<vmem>>, vector<1x128xf32>
    %11 = vector.shape_cast %10 : vector<1x128xf32> to vector<1x128xf32>
    %12 = vector.broadcast %11 : vector<1x128xf32> to vector<8x128xf32>
    %c0_13 = arith.constant 0 : index
    %c0_14 = arith.constant 0 : index
    %13 = vector.load %arg1[%c0_13, %c0_14] : memref<8x128xf32, #tpu.memory_space<vmem>>, vector<8x128xf32>
    %c0_i32 = arith.constant 0 : i32
    %14 = arith.index_cast %c0_i32 : i32 to index
    %c0_15 = arith.constant 0 : index
    %c0_16 = arith.constant 0 : index
    %15 = vector.load %arg7[%14, %c0_15, %c0_16] : memref<8x8x384xf32, #tpu.memory_space<vmem>>, vector<1x8x384xf32>
    %16 = vector.shape_cast %15 : vector<1x8x384xf32> to vector<8x384xf32>
    %17 = arith.truncf %13 : vector<8x128xf32> to vector<8x128xbf16>
    %cst_17 = arith.constant dense<0.000000e+00> : vector<8x384xf32>
    %18 = tpu.matmul %17, %9, %cst_17 {dimension_numbers = #tpu.dot_dimension_numbers<[1], [0], [0], [1], [0, 0, 1, 1], [], []>} : vector<8x128xbf16>, vector<128x384xbf16>, vector<8x384xf32> -> vector<8x384xf32>
    %19 = vector.extract_strided_slice %16 {offsets = [0, 0], sizes = [8, 128], strides = [1, 1]} : vector<8x384xf32> to vector<8x128xf32>
    %20 = vector.extract_strided_slice %16 {offsets = [0, 128], sizes = [8, 128], strides = [1, 1]} : vector<8x384xf32> to vector<8x128xf32>
    %21 = vector.extract_strided_slice %16 {offsets = [0, 256], sizes = [8, 128], strides = [1, 1]} : vector<8x384xf32> to vector<8x128xf32>
    %22 = vector.extract_strided_slice %18 {offsets = [0, 0], sizes = [8, 128], strides = [1, 1]} : vector<8x384xf32> to vector<8x128xf32>
    %23 = vector.extract_strided_slice %18 {offsets = [0, 128], sizes = [8, 128], strides = [1, 1]} : vector<8x384xf32> to vector<8x128xf32>
    %24 = vector.extract_strided_slice %18 {offsets = [0, 256], sizes = [8, 128], strides = [1, 1]} : vector<8x384xf32> to vector<8x128xf32>
    %25 = arith.addf %19, %22 : vector<8x128xf32>
    %26 = arith.negf %25 : vector<8x128xf32>
    %27 = math.exp %26 : vector<8x128xf32>
    %cst_18 = arith.constant 1.000000e+00 : f32
    %28 = vector.broadcast %cst_18 : f32 to vector<8x128xf32>
    %29 = arith.addf %28, %27 : vector<8x128xf32>
    %30 = arith.divf %28, %29 : vector<8x128xf32>
    %31 = arith.addf %20, %23 : vector<8x128xf32>
    %32 = arith.negf %31 : vector<8x128xf32>
    %33 = math.exp %32 : vector<8x128xf32>
    %cst_19 = arith.constant 1.000000e+00 : f32
    %34 = vector.broadcast %cst_19 : f32 to vector<8x128xf32>
    %35 = arith.addf %34, %33 : vector<8x128xf32>
    %36 = arith.divf %34, %35 : vector<8x128xf32>
    %37 = arith.addf %24, %12 : vector<8x128xf32>
    %38 = arith.mulf %30, %37 : vector<8x128xf32>
    %39 = arith.addf %21, %38 : vector<8x128xf32>
    %40 = math.tanh %39 : vector<8x128xf32>
    %cst_20 = arith.constant 1.000000e+00 : f32
    %41 = vector.broadcast %cst_20 : f32 to vector<8x128xf32>
    %42 = arith.subf %41, %36 : vector<8x128xf32>
    %43 = arith.mulf %42, %40 : vector<8x128xf32>
    %44 = arith.mulf %36, %13 : vector<8x128xf32>
    %45 = arith.addf %43, %44 : vector<8x128xf32>
    %c1_i32 = arith.constant 1 : i32
    %46 = arith.index_cast %c1_i32 : i32 to index
    %c0_21 = arith.constant 0 : index
    %c0_22 = arith.constant 0 : index
    %47 = vector.load %arg7[%46, %c0_21, %c0_22] : memref<8x8x384xf32, #tpu.memory_space<vmem>>, vector<1x8x384xf32>
    %48 = vector.shape_cast %47 : vector<1x8x384xf32> to vector<8x384xf32>
    %49 = arith.truncf %45 : vector<8x128xf32> to vector<8x128xbf16>
    %cst_23 = arith.constant dense<0.000000e+00> : vector<8x384xf32>
    %50 = tpu.matmul %49, %9, %cst_23 {dimension_numbers = #tpu.dot_dimension_numbers<[1], [0], [0], [1], [0, 0, 1, 1], [], []>} : vector<8x128xbf16>, vector<128x384xbf16>, vector<8x384xf32> -> vector<8x384xf32>
    %51 = vector.extract_strided_slice %48 {offsets = [0, 0], sizes = [8, 128], strides = [1, 1]} : vector<8x384xf32> to vector<8x128xf32>
    %52 = vector.extract_strided_slice %48 {offsets = [0, 128], sizes = [8, 128], strides = [1, 1]} : vector<8x384xf32> to vector<8x128xf32>
    %53 = vector.extract_strided_slice %48 {offsets = [0, 256], sizes = [8, 128], strides = [1, 1]} : vector<8x384xf32> to vector<8x128xf32>
    %54 = vector.extract_strided_slice %50 {offsets = [0, 0], sizes = [8, 128], strides = [1, 1]} : vector<8x384xf32> to vector<8x128xf32>
    %55 = vector.extract_strided_slice %50 {offsets = [0, 128], sizes = [8, 128], strides = [1, 1]} : vector<8x384xf32> to vector<8x128xf32>
    %56 = vector.extract_strided_slice %50 {offsets = [0, 256], sizes = [8, 128], strides = [1, 1]} : vector<8x384xf32> to vector<8x128xf32>
    %57 = arith.addf %51, %54 : vector<8x128xf32>
    %58 = arith.negf %57 : vector<8x128xf32>
    %59 = math.exp %58 : vector<8x128xf32>
    %cst_24 = arith.constant 1.000000e+00 : f32
    %60 = vector.broadcast %cst_24 : f32 to vector<8x128xf32>
    %61 = arith.addf %60, %59 : vector<8x128xf32>
    %62 = arith.divf %60, %61 : vector<8x128xf32>
    %63 = arith.addf %52, %55 : vector<8x128xf32>
    %64 = arith.negf %63 : vector<8x128xf32>
    %65 = math.exp %64 : vector<8x128xf32>
    %cst_25 = arith.constant 1.000000e+00 : f32
    %66 = vector.broadcast %cst_25 : f32 to vector<8x128xf32>
    %67 = arith.addf %66, %65 : vector<8x128xf32>
    %68 = arith.divf %66, %67 : vector<8x128xf32>
    %69 = arith.addf %56, %12 : vector<8x128xf32>
    %70 = arith.mulf %62, %69 : vector<8x128xf32>
    %71 = arith.addf %53, %70 : vector<8x128xf32>
    %72 = math.tanh %71 : vector<8x128xf32>
    %cst_26 = arith.constant 1.000000e+00 : f32
    %73 = vector.broadcast %cst_26 : f32 to vector<8x128xf32>
    %74 = arith.subf %73, %68 : vector<8x128xf32>
    %75 = arith.mulf %74, %72 : vector<8x128xf32>
    %76 = arith.mulf %68, %45 : vector<8x128xf32>
    %77 = arith.addf %75, %76 : vector<8x128xf32>
    %c2_i32 = arith.constant 2 : i32
    %78 = arith.index_cast %c2_i32 : i32 to index
    %c0_27 = arith.constant 0 : index
    %c0_28 = arith.constant 0 : index
    %79 = vector.load %arg7[%78, %c0_27, %c0_28] : memref<8x8x384xf32, #tpu.memory_space<vmem>>, vector<1x8x384xf32>
    %80 = vector.shape_cast %79 : vector<1x8x384xf32> to vector<8x384xf32>
    %81 = arith.truncf %77 : vector<8x128xf32> to vector<8x128xbf16>
    %cst_29 = arith.constant dense<0.000000e+00> : vector<8x384xf32>
    %82 = tpu.matmul %81, %9, %cst_29 {dimension_numbers = #tpu.dot_dimension_numbers<[1], [0], [0], [1], [0, 0, 1, 1], [], []>} : vector<8x128xbf16>, vector<128x384xbf16>, vector<8x384xf32> -> vector<8x384xf32>
    %83 = vector.extract_strided_slice %80 {offsets = [0, 0], sizes = [8, 128], strides = [1, 1]} : vector<8x384xf32> to vector<8x128xf32>
    %84 = vector.extract_strided_slice %80 {offsets = [0, 128], sizes = [8, 128], strides = [1, 1]} : vector<8x384xf32> to vector<8x128xf32>
    %85 = vector.extract_strided_slice %80 {offsets = [0, 256], sizes = [8, 128], strides = [1, 1]} : vector<8x384xf32> to vector<8x128xf32>
    %86 = vector.extract_strided_slice %82 {offsets = [0, 0], sizes = [8, 128], strides = [1, 1]} : vector<8x384xf32> to vector<8x128xf32>
    %87 = vector.extract_strided_slice %82 {offsets = [0, 128], sizes = [8, 128], strides = [1, 1]} : vector<8x384xf32> to vector<8x128xf32>
    %88 = vector.extract_strided_slice %82 {offsets = [0, 256], sizes = [8, 128], strides = [1, 1]} : vector<8x384xf32> to vector<8x128xf32>
    %89 = arith.addf %83, %86 : vector<8x128xf32>
    %90 = arith.negf %89 : vector<8x128xf32>
    %91 = math.exp %90 : vector<8x128xf32>
    %cst_30 = arith.constant 1.000000e+00 : f32
    %92 = vector.broadcast %cst_30 : f32 to vector<8x128xf32>
    %93 = arith.addf %92, %91 : vector<8x128xf32>
    %94 = arith.divf %92, %93 : vector<8x128xf32>
    %95 = arith.addf %84, %87 : vector<8x128xf32>
    %96 = arith.negf %95 : vector<8x128xf32>
    %97 = math.exp %96 : vector<8x128xf32>
    %cst_31 = arith.constant 1.000000e+00 : f32
    %98 = vector.broadcast %cst_31 : f32 to vector<8x128xf32>
    %99 = arith.addf %98, %97 : vector<8x128xf32>
    %100 = arith.divf %98, %99 : vector<8x128xf32>
    %101 = arith.addf %88, %12 : vector<8x128xf32>
    %102 = arith.mulf %94, %101 : vector<8x128xf32>
    %103 = arith.addf %85, %102 : vector<8x128xf32>
    %104 = math.tanh %103 : vector<8x128xf32>
    %cst_32 = arith.constant 1.000000e+00 : f32
    %105 = vector.broadcast %cst_32 : f32 to vector<8x128xf32>
    %106 = arith.subf %105, %100 : vector<8x128xf32>
    %107 = arith.mulf %106, %104 : vector<8x128xf32>
    %108 = arith.mulf %100, %77 : vector<8x128xf32>
    %109 = arith.addf %107, %108 : vector<8x128xf32>
    %c3_i32 = arith.constant 3 : i32
    %110 = arith.index_cast %c3_i32 : i32 to index
    %c0_33 = arith.constant 0 : index
    %c0_34 = arith.constant 0 : index
    %111 = vector.load %arg7[%110, %c0_33, %c0_34] : memref<8x8x384xf32, #tpu.memory_space<vmem>>, vector<1x8x384xf32>
    %112 = vector.shape_cast %111 : vector<1x8x384xf32> to vector<8x384xf32>
    %113 = arith.truncf %109 : vector<8x128xf32> to vector<8x128xbf16>
    %cst_35 = arith.constant dense<0.000000e+00> : vector<8x384xf32>
    %114 = tpu.matmul %113, %9, %cst_35 {dimension_numbers = #tpu.dot_dimension_numbers<[1], [0], [0], [1], [0, 0, 1, 1], [], []>} : vector<8x128xbf16>, vector<128x384xbf16>, vector<8x384xf32> -> vector<8x384xf32>
    %115 = vector.extract_strided_slice %112 {offsets = [0, 0], sizes = [8, 128], strides = [1, 1]} : vector<8x384xf32> to vector<8x128xf32>
    %116 = vector.extract_strided_slice %112 {offsets = [0, 128], sizes = [8, 128], strides = [1, 1]} : vector<8x384xf32> to vector<8x128xf32>
    %117 = vector.extract_strided_slice %112 {offsets = [0, 256], sizes = [8, 128], strides = [1, 1]} : vector<8x384xf32> to vector<8x128xf32>
    %118 = vector.extract_strided_slice %114 {offsets = [0, 0], sizes = [8, 128], strides = [1, 1]} : vector<8x384xf32> to vector<8x128xf32>
    %119 = vector.extract_strided_slice %114 {offsets = [0, 128], sizes = [8, 128], strides = [1, 1]} : vector<8x384xf32> to vector<8x128xf32>
    %120 = vector.extract_strided_slice %114 {offsets = [0, 256], sizes = [8, 128], strides = [1, 1]} : vector<8x384xf32> to vector<8x128xf32>
    %121 = arith.addf %115, %118 : vector<8x128xf32>
    %122 = arith.negf %121 : vector<8x128xf32>
    %123 = math.exp %122 : vector<8x128xf32>
    %cst_36 = arith.constant 1.000000e+00 : f32
    %124 = vector.broadcast %cst_36 : f32 to vector<8x128xf32>
    %125 = arith.addf %124, %123 : vector<8x128xf32>
    %126 = arith.divf %124, %125 : vector<8x128xf32>
    %127 = arith.addf %116, %119 : vector<8x128xf32>
    %128 = arith.negf %127 : vector<8x128xf32>
    %129 = math.exp %128 : vector<8x128xf32>
    %cst_37 = arith.constant 1.000000e+00 : f32
    %130 = vector.broadcast %cst_37 : f32 to vector<8x128xf32>
    %131 = arith.addf %130, %129 : vector<8x128xf32>
    %132 = arith.divf %130, %131 : vector<8x128xf32>
    %133 = arith.addf %120, %12 : vector<8x128xf32>
    %134 = arith.mulf %126, %133 : vector<8x128xf32>
    %135 = arith.addf %117, %134 : vector<8x128xf32>
    %136 = math.tanh %135 : vector<8x128xf32>
    %cst_38 = arith.constant 1.000000e+00 : f32
    %137 = vector.broadcast %cst_38 : f32 to vector<8x128xf32>
    %138 = arith.subf %137, %132 : vector<8x128xf32>
    %139 = arith.mulf %138, %136 : vector<8x128xf32>
    %140 = arith.mulf %132, %109 : vector<8x128xf32>
    %141 = arith.addf %139, %140 : vector<8x128xf32>
    %c4_i32 = arith.constant 4 : i32
    %142 = arith.index_cast %c4_i32 : i32 to index
    %c0_39 = arith.constant 0 : index
    %c0_40 = arith.constant 0 : index
    %143 = vector.load %arg7[%142, %c0_39, %c0_40] : memref<8x8x384xf32, #tpu.memory_space<vmem>>, vector<1x8x384xf32>
    %144 = vector.shape_cast %143 : vector<1x8x384xf32> to vector<8x384xf32>
    %145 = arith.truncf %141 : vector<8x128xf32> to vector<8x128xbf16>
    %cst_41 = arith.constant dense<0.000000e+00> : vector<8x384xf32>
    %146 = tpu.matmul %145, %9, %cst_41 {dimension_numbers = #tpu.dot_dimension_numbers<[1], [0], [0], [1], [0, 0, 1, 1], [], []>} : vector<8x128xbf16>, vector<128x384xbf16>, vector<8x384xf32> -> vector<8x384xf32>
    %147 = vector.extract_strided_slice %144 {offsets = [0, 0], sizes = [8, 128], strides = [1, 1]} : vector<8x384xf32> to vector<8x128xf32>
    %148 = vector.extract_strided_slice %144 {offsets = [0, 128], sizes = [8, 128], strides = [1, 1]} : vector<8x384xf32> to vector<8x128xf32>
    %149 = vector.extract_strided_slice %144 {offsets = [0, 256], sizes = [8, 128], strides = [1, 1]} : vector<8x384xf32> to vector<8x128xf32>
    %150 = vector.extract_strided_slice %146 {offsets = [0, 0], sizes = [8, 128], strides = [1, 1]} : vector<8x384xf32> to vector<8x128xf32>
    %151 = vector.extract_strided_slice %146 {offsets = [0, 128], sizes = [8, 128], strides = [1, 1]} : vector<8x384xf32> to vector<8x128xf32>
    %152 = vector.extract_strided_slice %146 {offsets = [0, 256], sizes = [8, 128], strides = [1, 1]} : vector<8x384xf32> to vector<8x128xf32>
    %153 = arith.addf %147, %150 : vector<8x128xf32>
    %154 = arith.negf %153 : vector<8x128xf32>
    %155 = math.exp %154 : vector<8x128xf32>
    %cst_42 = arith.constant 1.000000e+00 : f32
    %156 = vector.broadcast %cst_42 : f32 to vector<8x128xf32>
    %157 = arith.addf %156, %155 : vector<8x128xf32>
    %158 = arith.divf %156, %157 : vector<8x128xf32>
    %159 = arith.addf %148, %151 : vector<8x128xf32>
    %160 = arith.negf %159 : vector<8x128xf32>
    %161 = math.exp %160 : vector<8x128xf32>
    %cst_43 = arith.constant 1.000000e+00 : f32
    %162 = vector.broadcast %cst_43 : f32 to vector<8x128xf32>
    %163 = arith.addf %162, %161 : vector<8x128xf32>
    %164 = arith.divf %162, %163 : vector<8x128xf32>
    %165 = arith.addf %152, %12 : vector<8x128xf32>
    %166 = arith.mulf %158, %165 : vector<8x128xf32>
    %167 = arith.addf %149, %166 : vector<8x128xf32>
    %168 = math.tanh %167 : vector<8x128xf32>
    %cst_44 = arith.constant 1.000000e+00 : f32
    %169 = vector.broadcast %cst_44 : f32 to vector<8x128xf32>
    %170 = arith.subf %169, %164 : vector<8x128xf32>
    %171 = arith.mulf %170, %168 : vector<8x128xf32>
    %172 = arith.mulf %164, %141 : vector<8x128xf32>
    %173 = arith.addf %171, %172 : vector<8x128xf32>
    %c5_i32 = arith.constant 5 : i32
    %174 = arith.index_cast %c5_i32 : i32 to index
    %c0_45 = arith.constant 0 : index
    %c0_46 = arith.constant 0 : index
    %175 = vector.load %arg7[%174, %c0_45, %c0_46] : memref<8x8x384xf32, #tpu.memory_space<vmem>>, vector<1x8x384xf32>
    %176 = vector.shape_cast %175 : vector<1x8x384xf32> to vector<8x384xf32>
    %177 = arith.truncf %173 : vector<8x128xf32> to vector<8x128xbf16>
    %cst_47 = arith.constant dense<0.000000e+00> : vector<8x384xf32>
    %178 = tpu.matmul %177, %9, %cst_47 {dimension_numbers = #tpu.dot_dimension_numbers<[1], [0], [0], [1], [0, 0, 1, 1], [], []>} : vector<8x128xbf16>, vector<128x384xbf16>, vector<8x384xf32> -> vector<8x384xf32>
    %179 = vector.extract_strided_slice %176 {offsets = [0, 0], sizes = [8, 128], strides = [1, 1]} : vector<8x384xf32> to vector<8x128xf32>
    %180 = vector.extract_strided_slice %176 {offsets = [0, 128], sizes = [8, 128], strides = [1, 1]} : vector<8x384xf32> to vector<8x128xf32>
    %181 = vector.extract_strided_slice %176 {offsets = [0, 256], sizes = [8, 128], strides = [1, 1]} : vector<8x384xf32> to vector<8x128xf32>
    %182 = vector.extract_strided_slice %178 {offsets = [0, 0], sizes = [8, 128], strides = [1, 1]} : vector<8x384xf32> to vector<8x128xf32>
    %183 = vector.extract_strided_slice %178 {offsets = [0, 128], sizes = [8, 128], strides = [1, 1]} : vector<8x384xf32> to vector<8x128xf32>
    %184 = vector.extract_strided_slice %178 {offsets = [0, 256], sizes = [8, 128], strides = [1, 1]} : vector<8x384xf32> to vector<8x128xf32>
    %185 = arith.addf %179, %182 : vector<8x128xf32>
    %186 = arith.negf %185 : vector<8x128xf32>
    %187 = math.exp %186 : vector<8x128xf32>
    %cst_48 = arith.constant 1.000000e+00 : f32
    %188 = vector.broadcast %cst_48 : f32 to vector<8x128xf32>
    %189 = arith.addf %188, %187 : vector<8x128xf32>
    %190 = arith.divf %188, %189 : vector<8x128xf32>
    %191 = arith.addf %180, %183 : vector<8x128xf32>
    %192 = arith.negf %191 : vector<8x128xf32>
    %193 = math.exp %192 : vector<8x128xf32>
    %cst_49 = arith.constant 1.000000e+00 : f32
    %194 = vector.broadcast %cst_49 : f32 to vector<8x128xf32>
    %195 = arith.addf %194, %193 : vector<8x128xf32>
    %196 = arith.divf %194, %195 : vector<8x128xf32>
    %197 = arith.addf %184, %12 : vector<8x128xf32>
    %198 = arith.mulf %190, %197 : vector<8x128xf32>
    %199 = arith.addf %181, %198 : vector<8x128xf32>
    %200 = math.tanh %199 : vector<8x128xf32>
    %cst_50 = arith.constant 1.000000e+00 : f32
    %201 = vector.broadcast %cst_50 : f32 to vector<8x128xf32>
    %202 = arith.subf %201, %196 : vector<8x128xf32>
    %203 = arith.mulf %202, %200 : vector<8x128xf32>
    %204 = arith.mulf %196, %173 : vector<8x128xf32>
    %205 = arith.addf %203, %204 : vector<8x128xf32>
    %c6_i32 = arith.constant 6 : i32
    %206 = arith.index_cast %c6_i32 : i32 to index
    %c0_51 = arith.constant 0 : index
    %c0_52 = arith.constant 0 : index
    %207 = vector.load %arg7[%206, %c0_51, %c0_52] : memref<8x8x384xf32, #tpu.memory_space<vmem>>, vector<1x8x384xf32>
    %208 = vector.shape_cast %207 : vector<1x8x384xf32> to vector<8x384xf32>
    %209 = arith.truncf %205 : vector<8x128xf32> to vector<8x128xbf16>
    %cst_53 = arith.constant dense<0.000000e+00> : vector<8x384xf32>
    %210 = tpu.matmul %209, %9, %cst_53 {dimension_numbers = #tpu.dot_dimension_numbers<[1], [0], [0], [1], [0, 0, 1, 1], [], []>} : vector<8x128xbf16>, vector<128x384xbf16>, vector<8x384xf32> -> vector<8x384xf32>
    %211 = vector.extract_strided_slice %208 {offsets = [0, 0], sizes = [8, 128], strides = [1, 1]} : vector<8x384xf32> to vector<8x128xf32>
    %212 = vector.extract_strided_slice %208 {offsets = [0, 128], sizes = [8, 128], strides = [1, 1]} : vector<8x384xf32> to vector<8x128xf32>
    %213 = vector.extract_strided_slice %208 {offsets = [0, 256], sizes = [8, 128], strides = [1, 1]} : vector<8x384xf32> to vector<8x128xf32>
    %214 = vector.extract_strided_slice %210 {offsets = [0, 0], sizes = [8, 128], strides = [1, 1]} : vector<8x384xf32> to vector<8x128xf32>
    %215 = vector.extract_strided_slice %210 {offsets = [0, 128], sizes = [8, 128], strides = [1, 1]} : vector<8x384xf32> to vector<8x128xf32>
    %216 = vector.extract_strided_slice %210 {offsets = [0, 256], sizes = [8, 128], strides = [1, 1]} : vector<8x384xf32> to vector<8x128xf32>
    %217 = arith.addf %211, %214 : vector<8x128xf32>
    %218 = arith.negf %217 : vector<8x128xf32>
    %219 = math.exp %218 : vector<8x128xf32>
    %cst_54 = arith.constant 1.000000e+00 : f32
    %220 = vector.broadcast %cst_54 : f32 to vector<8x128xf32>
    %221 = arith.addf %220, %219 : vector<8x128xf32>
    %222 = arith.divf %220, %221 : vector<8x128xf32>
    %223 = arith.addf %212, %215 : vector<8x128xf32>
    %224 = arith.negf %223 : vector<8x128xf32>
    %225 = math.exp %224 : vector<8x128xf32>
    %cst_55 = arith.constant 1.000000e+00 : f32
    %226 = vector.broadcast %cst_55 : f32 to vector<8x128xf32>
    %227 = arith.addf %226, %225 : vector<8x128xf32>
    %228 = arith.divf %226, %227 : vector<8x128xf32>
    %229 = arith.addf %216, %12 : vector<8x128xf32>
    %230 = arith.mulf %222, %229 : vector<8x128xf32>
    %231 = arith.addf %213, %230 : vector<8x128xf32>
    %232 = math.tanh %231 : vector<8x128xf32>
    %cst_56 = arith.constant 1.000000e+00 : f32
    %233 = vector.broadcast %cst_56 : f32 to vector<8x128xf32>
    %234 = arith.subf %233, %228 : vector<8x128xf32>
    %235 = arith.mulf %234, %232 : vector<8x128xf32>
    %236 = arith.mulf %228, %205 : vector<8x128xf32>
    %237 = arith.addf %235, %236 : vector<8x128xf32>
    %c7_i32 = arith.constant 7 : i32
    %238 = arith.index_cast %c7_i32 : i32 to index
    %c0_57 = arith.constant 0 : index
    %c0_58 = arith.constant 0 : index
    %239 = vector.load %arg7[%238, %c0_57, %c0_58] : memref<8x8x384xf32, #tpu.memory_space<vmem>>, vector<1x8x384xf32>
    %240 = vector.shape_cast %239 : vector<1x8x384xf32> to vector<8x384xf32>
    %241 = arith.truncf %237 : vector<8x128xf32> to vector<8x128xbf16>
    %cst_59 = arith.constant dense<0.000000e+00> : vector<8x384xf32>
    %242 = tpu.matmul %241, %9, %cst_59 {dimension_numbers = #tpu.dot_dimension_numbers<[1], [0], [0], [1], [0, 0, 1, 1], [], []>} : vector<8x128xbf16>, vector<128x384xbf16>, vector<8x384xf32> -> vector<8x384xf32>
    %243 = vector.extract_strided_slice %240 {offsets = [0, 0], sizes = [8, 128], strides = [1, 1]} : vector<8x384xf32> to vector<8x128xf32>
    %244 = vector.extract_strided_slice %240 {offsets = [0, 128], sizes = [8, 128], strides = [1, 1]} : vector<8x384xf32> to vector<8x128xf32>
    %245 = vector.extract_strided_slice %240 {offsets = [0, 256], sizes = [8, 128], strides = [1, 1]} : vector<8x384xf32> to vector<8x128xf32>
    %246 = vector.extract_strided_slice %242 {offsets = [0, 0], sizes = [8, 128], strides = [1, 1]} : vector<8x384xf32> to vector<8x128xf32>
    %247 = vector.extract_strided_slice %242 {offsets = [0, 128], sizes = [8, 128], strides = [1, 1]} : vector<8x384xf32> to vector<8x128xf32>
    %248 = vector.extract_strided_slice %242 {offsets = [0, 256], sizes = [8, 128], strides = [1, 1]} : vector<8x384xf32> to vector<8x128xf32>
    %249 = arith.addf %243, %246 : vector<8x128xf32>
    %250 = arith.negf %249 : vector<8x128xf32>
    %251 = math.exp %250 : vector<8x128xf32>
    %cst_60 = arith.constant 1.000000e+00 : f32
    %252 = vector.broadcast %cst_60 : f32 to vector<8x128xf32>
    %253 = arith.addf %252, %251 : vector<8x128xf32>
    %254 = arith.divf %252, %253 : vector<8x128xf32>
    %255 = arith.addf %244, %247 : vector<8x128xf32>
    %256 = arith.negf %255 : vector<8x128xf32>
    %257 = math.exp %256 : vector<8x128xf32>
    %cst_61 = arith.constant 1.000000e+00 : f32
    %258 = vector.broadcast %cst_61 : f32 to vector<8x128xf32>
    %259 = arith.addf %258, %257 : vector<8x128xf32>
    %260 = arith.divf %258, %259 : vector<8x128xf32>
    %261 = arith.addf %248, %12 : vector<8x128xf32>
    %262 = arith.mulf %254, %261 : vector<8x128xf32>
    %263 = arith.addf %245, %262 : vector<8x128xf32>
    %264 = math.tanh %263 : vector<8x128xf32>
    %cst_62 = arith.constant 1.000000e+00 : f32
    %265 = vector.broadcast %cst_62 : f32 to vector<8x128xf32>
    %266 = arith.subf %265, %260 : vector<8x128xf32>
    %267 = arith.mulf %266, %264 : vector<8x128xf32>
    %268 = arith.mulf %260, %237 : vector<8x128xf32>
    %269 = arith.addf %267, %268 : vector<8x128xf32>
    %c8_i32 = arith.constant 8 : i32
    %cst_63 = arith.constant 0.000000e+00 : f32
    %270 = vector.broadcast %cst_63 : f32 to vector<8x128xf32>
    %271 = arith.maximumf %269, %270 : vector<8x128xf32>
    %c0_64 = arith.constant 0 : index
    %c0_65 = arith.constant 0 : index
    %272 = vector.load %arg6[%c0_64, %c0_65] : memref<8x128xf32, #tpu.memory_space<vmem>>, vector<8x128xf32>
    tpu.vector_store %arg6[%c0_64, %c0_65], %271 {strides = array<i32>} : memref<8x128xf32, #tpu.memory_space<vmem>>, vector<8x128xf32>,
    return
  }
}

</mosaic_0001>

<llo_original>
// kernel: tpu_custom_call.1
$region0: #{tpu_custom_call.1}
  #allocation0 [shape = 'u32[]', space=smem, size = 0x4, offset = 0x4, fixed_abs, tag = 'smem constant byte address 0x4 - core index']
  #allocation1 [shape = 'u32[144,128]{1,0:T(1,128)}', space=vmem, size = 0x12000, scoped, tag = 'internal scratch']
  #allocation2 [shape = 'f32[8,8,384]{2,1,0:T(8,128)}', space=vmem, size = 0x18000, scoped, tag = 'scratch operand']
  %s0 = inlined_call_operand.hbm [shape: bf16[8,8,128], index: 0, kind: input, shape index: {}]
  %s1 = inlined_call_operand.hbm [shape: f32[8,128], index: 1, kind: input, shape index: {}]
  %s2 = inlined_call_operand.hbm [shape: bf16[128,384], index: 2, kind: input, shape index: {}]
  %s3 = inlined_call_operand.hbm [shape: bf16[128,384], index: 3, kind: input, shape index: {}]
  %s4 = inlined_call_operand.vmem [shape: f32[1,384], index: 4, kind: input, shape index: {}]
  %s5 = inlined_call_operand.vmem [shape: f32[1,128], index: 5, kind: input, shape index: {}]
  %s6 = inlined_call_operand.hbm [shape: f32[8,128], index: 6, kind: output, shape index: {}]
  %s7 = sld [smem:[#allocation0]]
  $region50: #{tpu_custom_call.1} parent=0
    _
  %s9 = ssub.s32 1, %s7
  %s10 = scalar_select 0, %s9, %s7
  $region1: #{tpu_custom_call.1} parent=0
    #allocation3 [shape = 'u8[16384]{0}', space=vmem, size = 0x4000, scoped, tag = 'input window, operand 0, single buffered']
    #allocation4 [shape = 's32[1]{0}', space=sflag, size = 0x4, scoped, tag = 'scoped memory for tpu_custom_call.1']
    #allocation5 [shape = 's32[1]{0}', space=sflag, size = 0x4, scoped, tag = 'scoped memory for tpu_custom_call.1']
    #allocation6 [shape = 'u8[4096]{0}', space=vmem, size = 0x1000, scoped, tag = 'input window, operand 1, single buffered']
    #allocation7 [shape = 's32[1]{0}', space=sflag, size = 0x4, scoped, tag = 'scoped memory for tpu_custom_call.1']
    #allocation8 [shape = 'u8[98304]{0}', space=vmem, size = 0x18000, scoped, tag = 'input window, operand 2, single buffered']
    #allocation9 [shape = 'u8[98304]{0}', space=vmem, size = 0x18000, scoped, tag = 'input window, operand 3, single buffered']
    #allocation10 [shape = 's32[1]{0}', space=sflag, size = 0x4, scoped, tag = 'scoped memory for tpu_custom_call.1']
    #allocation11 [shape = 'u8[4096]{0}', space=vmem, size = 0x1000, scoped, tag = 'output window, operand 0, single buffered']
    %11 = vsyncpa [#allocation4], 0
    %12 = vsyncpa [#allocation7], 0
    %13 = vsyncpa [#allocation10], 0
    %14 = vsyncpa [#allocation5], 0
    // Predicated region
    $region2: #{tpu_custom_call.1} parent=1 // pred_check
      _
    $region3: #{tpu_custom_call.1} parent=1 // pred_check_branch
      %16 = sbr.rel (0) target = $region5
    $region4: #{tpu_custom_call.1} parent=1 // pred_region
      %s18 = ssub.s32 512, 512
      %19 = vsyncadd [#allocation4], %s18
      %s20 = sshll.u32 [#allocation3], 4
      %s21 = int_to_ptr.vmem [resolvable:$true] %s20
      %26 = dma.hbm_to_vmem [thread:$0]  %s0, 512, %s21, [#allocation4], 64, 64, 4
    $region5: #{tpu_custom_call.1} parent=1 // pred_fallthru
      _
    // Predicated region
    $region6: #{tpu_custom_call.1} parent=1 // pred_check
      _
    $region7: #{tpu_custom_call.1} parent=1 // pred_check_branch
      %28 = sbr.rel (0) target = $region9
    $region8: #{tpu_custom_call.1} parent=1 // pred_region
      %s30 = ssub.s32 128, 128
      %31 = vsyncadd [#allocation7], %s30
      %s33 = sshll.u32 [#allocation6], 4
      %s34 = int_to_ptr.vmem [resolvable:$true] %s33
      %36 = dma.hbm_to_vmem [thread:$0]  %s1, 128, %s34, [#allocation7]
    $region9: #{tpu_custom_call.1} parent=1 // pred_fallthru
      _
    // Predicated region
    $region10: #{tpu_custom_call.1} parent=1 // pred_check
      _
    $region11: #{tpu_custom_call.1} parent=1 // pred_check_branch
      %38 = sbr.rel (0) target = $region13
    $region12: #{tpu_custom_call.1} parent=1 // pred_region
      %s40 = ssub.s32 3072, 3072
      %41 = vsyncadd [#allocation7], %s40
      %s42 = sshll.u32 [#allocation8], 4
      %s43 = int_to_ptr.vmem [resolvable:$true] %s42
      %48 = dma.hbm_to_vmem [thread:$0]  %s2, 3072, %s43, [#allocation7], 192, 192, 12
    $region13: #{tpu_custom_call.1} parent=1 // pred_fallthru
      _
    // Predicated region
    $region14: #{tpu_custom_call.1} parent=1 // pred_check
      _
    $region15: #{tpu_custom_call.1} parent=1 // pred_check_branch
      %50 = sbr.rel (0) target = $region17
    $region16: #{tpu_custom_call.1} parent=1 // pred_region
      %s52 = ssub.s32 3072, 3072
      %53 = vsyncadd [#allocation10], %s52
      %s54 = sshll.u32 [#allocation9], 4
      %s55 = int_to_ptr.vmem [resolvable:$true] %s54
      %60 = dma.hbm_to_vmem [thread:$0]  %s3, 3072, %s55, [#allocation10], 192, 192, 12
    $region17: #{tpu_custom_call.1} parent=1 // pred_fallthru
      _
    // Predicated region
    $region18: #{tpu_custom_call.1} parent=1 // pred_check
      _
    $region19: #{tpu_custom_call.1} parent=1 // pred_check_branch
      %62 = sbr.rel (0) target = $region21
    $region20: #{tpu_custom_call.1} parent=1 // pred_region
      _
    $region21: #{tpu_custom_call.1} parent=1 // pred_fallthru
      _
    // Predicated region
    $region22: #{tpu_custom_call.1} parent=1 // pred_check
      _
    $region23: #{tpu_custom_call.1} parent=1 // pred_check_branch
      %64 = sbr.rel (0) target = $region25
    $region24: #{tpu_custom_call.1} parent=1 // pred_region
      _
    $region25: #{tpu_custom_call.1} parent=1 // pred_fallthru
      _
    // Predicated region
    $region26: #{tpu_custom_call.1} parent=1 // pred_check
      _
    $region27: #{tpu_custom_call.1} parent=1 // pred_check_branch
      %66 = sbr.rel (0) target = $region29
    $region28: #{tpu_custom_call.1} parent=1 // pred_region
      %67 = dma.done [#allocation4], 512
    $region29: #{tpu_custom_call.1} parent=1 // pred_fallthru
      _
    // Predicated region
    $region30: #{tpu_custom_call.1} parent=1 // pred_check
      _
    $region31: #{tpu_custom_call.1} parent=1 // pred_check_branch
      %69 = sbr.rel (0) target = $region33
    $region32: #{tpu_custom_call.1} parent=1 // pred_region
      %70 = dma.done [#allocation7], 128
    $region33: #{tpu_custom_call.1} parent=1 // pred_fallthru
      _
    // Predicated region
    $region34: #{tpu_custom_call.1} parent=1 // pred_check
      _
    $region35: #{tpu_custom_call.1} parent=1 // pred_check_branch
      %72 = sbr.rel (0) target = $region37
    $region36: #{tpu_custom_call.1} parent=1 // pred_region
      %73 = dma.done [#allocation7], 3072
    $region37: #{tpu_custom_call.1} parent=1 // pred_fallthru
      _
    // Predicated region
    $region38: #{tpu_custom_call.1} parent=1 // pred_check
      _
    $region39: #{tpu_custom_call.1} parent=1 // pred_check_branch
      %75 = sbr.rel (0) target = $region41
    $region40: #{tpu_custom_call.1} parent=1 // pred_region
      %76 = dma.done [#allocation10], 3072
    $region41: #{tpu_custom_call.1} parent=1 // pred_fallthru
      _
    %v78 = vld [vmem:[#allocation3] sm:$0xf]
    %v79 = vld [vmem:[#allocation3 + $0x4] sm:$0xf]
    %v80 = vld [vmem:[#allocation3 + $0x8] sm:$0xf]
    %v81 = vld [vmem:[#allocation3 + $0xc] sm:$0xf]
    %v82 = vld [vmem:[#allocation3 + $0x10] sm:$0xf]
    %v83 = vld [vmem:[#allocation3 + $0x14] sm:$0xf]
    %v84 = vld [vmem:[#allocation3 + $0x18] sm:$0xf]
    %v85 = vld [vmem:[#allocation3 + $0x1c] sm:$0xf]
    %v86 = vld [vmem:[#allocation8] sm:$0xff]
    %v87 = vld [vmem:[#allocation8 + $0x8] sm:$0xf]
    %v88 = vld [vmem:[#allocation8 + $0xc] sm:$0xff]
    %v89 = vld [vmem:[#allocation8 + $0x14] sm:$0xf]
    %v90 = vld [vmem:[#allocation8 + $0x18] sm:$0xff]
    %v91 = vld [vmem:[#allocation8 + $0x20] sm:$0xf]
    %v92 = vld [vmem:[#allocation8 + $0x24] sm:$0xff]
    %v93 = vld [vmem:[#allocation8 + $0x2c] sm:$0xf]
    %v94 = vld [vmem:[#allocation8 + $0x30] sm:$0xff]
    %v95 = vld [vmem:[#allocation8 + $0x38] sm:$0xf]
    %v96 = vld [vmem:[#allocation8 + $0x3c] sm:$0xff]
    %v97 = vld [vmem:[#allocation8 + $0x44] sm:$0xf]
    %v98 = vld [vmem:[#allocation8 + $0x48] sm:$0xff]
    %v99 = vld [vmem:[#allocation8 + $0x50] sm:$0xf]
    %v100 = vld [vmem:[#allocation8 + $0x54] sm:$0xff]
    %v101 = vld [vmem:[#allocation8 + $0x5c] sm:$0xf]
    %v102 = vld [vmem:[#allocation8 + $0x60] sm:$0xff]
    %v103 = vld [vmem:[#allocation8 + $0x68] sm:$0xf]
    %v104 = vld [vmem:[#allocation8 + $0x6c] sm:$0xff]
    %v105 = vld [vmem:[#allocation8 + $0x74] sm:$0xf]
    %v106 = vld [vmem:[#allocation8 + $0x78] sm:$0xff]
    %v107 = vld [vmem:[#allocation8 + $0x80] sm:$0xf]
    %v108 = vld [vmem:[#allocation8 + $0x84] sm:$0xff]
    %v109 = vld [vmem:[#allocation8 + $0x8c] sm:$0xf]
    %v110 = vld [vmem:[#allocation8 + $0x90] sm:$0xff]
    %v111 = vld [vmem:[#allocation8 + $0x98] sm:$0xf]
    %v112 = vld [vmem:[#allocation8 + $0x9c] sm:$0xff]
    %v113 = vld [vmem:[#allocation8 + $0xa4] sm:$0xf]
    %v114 = vld [vmem:[#allocation8 + $0xa8] sm:$0xff]
    %v115 = vld [vmem:[#allocation8 + $0xb0] sm:$0xf]
    %v116 = vld [vmem:[#allocation8 + $0xb4] sm:$0xff]
    %v117 = vld [vmem:[#allocation8 + $0xbc] sm:$0xf]
    %v118 = vld [vmem:[%s4] sm:$0x7]
    %v120 = vlaneseq
    %v121 = vshrl.u32 %v120, 7
    %v122 = vsub.s32 0, %v121
    %v123 = vrot.slane %v118, %v122
    %v124 = vlaneseq
    %v125 = vshrl.u32 %v124, 7
    %v126 = vsub.s32 1, %v125
    %v127 = vrot.slane %v118, %v126
    %v128 = vlaneseq
    %v129 = vshrl.u32 %v128, 7
    %v130 = vsub.s32 2, %v129
    %v131 = vrot.slane %v118, %v130
    %v143 = vunpack.c.l.b16 %v78
    %v144 = vunpack.c.l.b16 %v79
    %v145 = vunpack.c.l.b16 %v80
    %v146 = vunpack.c.l.b16 %v81
    %v147 = vunpack.c.l.b16 %v82
    %v148 = vunpack.c.l.b16 %v83
    %v149 = vunpack.c.l.b16 %v84
    %v150 = vunpack.c.l.b16 %v85
    %v151 = vpack.c.b16 %v144, %v143
    %v152 = vpack.c.b16 %v146, %v145
    %v153 = vpack.c.b16 %v148, %v147
    %v154 = vpack.c.b16 %v150, %v149
    %v191 = vunpack.c.l.b16 %v86
    %v192 = vunpack.c.h.b16 %v86
    %v193 = vunpack.c.l.b16 %v87
    %v194 = vunpack.c.l.b16 %v88
    %v195 = vunpack.c.h.b16 %v88
    %v196 = vunpack.c.l.b16 %v89
    %v197 = vunpack.c.l.b16 %v90
    %v198 = vunpack.c.h.b16 %v90
    %v199 = vunpack.c.l.b16 %v91
    %v200 = vunpack.c.l.b16 %v92
    %v201 = vunpack.c.h.b16 %v92
    %v202 = vunpack.c.l.b16 %v93
    %v203 = vunpack.c.l.b16 %v94
    %v204 = vunpack.c.h.b16 %v94
    %v205 = vunpack.c.l.b16 %v95
    %v206 = vunpack.c.l.b16 %v96
    %v207 = vunpack.c.h.b16 %v96
    %v208 = vunpack.c.l.b16 %v97
    %v209 = vunpack.c.l.b16 %v98
    %v210 = vunpack.c.h.b16 %v98
    %v211 = vunpack.c.l.b16 %v99
    %v212 = vunpack.c.l.b16 %v100
    %v213 = vunpack.c.h.b16 %v100
    %v214 = vunpack.c.l.b16 %v101
    %v215 = vunpack.c.l.b16 %v102
    %v216 = vunpack.c.h.b16 %v102
    %v217 = vunpack.c.l.b16 %v103
    %v218 = vunpack.c.l.b16 %v104
    %v219 = vunpack.c.h.b16 %v104
    %v220 = vunpack.c.l.b16 %v105
    %v221 = vunpack.c.l.b16 %v106
    %v222 = vunpack.c.h.b16 %v106
    %v223 = vunpack.c.l.b16 %v107
    %v224 = vunpack.c.l.b16 %v108
    %v225 = vunpack.c.h.b16 %v108
    %v226 = vunpack.c.l.b16 %v109
    %v227 = vunpack.c.l.b16 %v110
    %v228 = vunpack.c.h.b16 %v110
    %v229 = vunpack.c.l.b16 %v111
    %v230 = vunpack.c.l.b16 %v112
    %v231 = vunpack.c.h.b16 %v112
    %v232 = vunpack.c.l.b16 %v113
    %v233 = vunpack.c.l.b16 %v114
    %v234 = vunpack.c.h.b16 %v114
    %v235 = vunpack.c.l.b16 %v115
    %v236 = vunpack.c.l.b16 %v116
    %v237 = vunpack.c.h.b16 %v116
    %v238 = vunpack.c.l.b16 %v117
    %v239 = vpack.c.b16 %v194, %v191
    %v240 = vpack.c.b16 %v195, %v192
    %v241 = vpack.c.b16 %v196, %v193
    %v242 = vpack.c.b16 %v200, %v197
    %v243 = vpack.c.b16 %v201, %v198
    %v244 = vpack.c.b16 %v202, %v199
    %v245 = vpack.c.b16 %v206, %v203
    %v246 = vpack.c.b16 %v207, %v204
    %v247 = vpack.c.b16 %v208, %v205
    %v248 = vpack.c.b16 %v212, %v209
    %v249 = vpack.c.b16 %v213, %v210
    %v250 = vpack.c.b16 %v214, %v211
    %v251 = vpack.c.b16 %v218, %v215
    %v252 = vpack.c.b16 %v219, %v216
    %v253 = vpack.c.b16 %v220, %v217
    %v254 = vpack.c.b16 %v224, %v221
    %v255 = vpack.c.b16 %v225, %v222
    %v256 = vpack.c.b16 %v226, %v223
    %v257 = vpack.c.b16 %v230, %v227
    %v258 = vpack.c.b16 %v231, %v228
    %v259 = vpack.c.b16 %v232, %v229
    %v260 = vpack.c.b16 %v236, %v233
    %v261 = vpack.c.b16 %v237, %v234
    %v262 = vpack.c.b16 %v238, %v235
    %287 = vmatprep.subr.bf16.mxu0 %v240
    %288 = vmatpush1.bf16.msra.mxu0 %v239
    %289 = vmatprep.subr.bf16.mxu0 %v243
    %290 = vmatpush1.bf16.msra.mxu0 %v242
    %291 = vmatprep.subr.bf16.mxu0 %v246
    %292 = vmatpush1.bf16.msra.mxu0 %v245
    %293 = vmatprep.subr.bf16.mxu0 %v249
    %294 = vmatpush1.bf16.msra.mxu0 %v248
    %295 = vmatprep.subr.bf16.mxu0 %v252
    %296 = vmatpush1.bf16.msra.mxu0 %v251
    %297 = vmatprep.subr.bf16.mxu0 %v255
    %298 = vmatpush1.bf16.msra.mxu0 %v254
    %299 = vmatprep.subr.bf16.mxu0 %v258
    %300 = vmatpush1.bf16.msra.mxu0 %v257
    %301 = vmatprep.subr.bf16.mxu0 %v261
    %302 = vmatpush1.bf16.msra.mxu0 %v260
    %303 = vmatprep.subr.bf16.mxu0 0
    %304 = vmatpush1.bf16.msra.mxu0 0
    %305 = vmatprep.subr.bf16.mxu0 0
    %306 = vmatpush1.bf16.msra.mxu0 0
    %307 = vmatprep.subr.bf16.mxu0 0
    %308 = vmatpush1.bf16.msra.mxu0 0
    %309 = vmatprep.subr.bf16.mxu0 0
    %310 = vmatpush1.bf16.msra.mxu0 0
    %311 = vmatprep.subr.bf16.mxu0 0
    %312 = vmatpush1.bf16.msra.mxu0 0
    %313 = vmatprep.subr.bf16.mxu0 0
    %314 = vmatpush1.bf16.msra.mxu0 0
    %315 = vmatprep.subr.bf16.mxu0 0
    %316 = vmatpush1.bf16.msra.mxu0 0
    %317 = vmatprep.subr.bf16.mxu0 0
    %318 = vmatpush1.bf16.msra.mxu0 0
    %319 = vmatprep.mubr.bf16.mxu0 0
    %320 = vmatmul.mubr.bf16.gmra.mrb[0].mxu0 %v151
    %v321 = vpop.f32.mrb[0].mxu0
    %v322 = vadd.f32 %v123, %v321
    %v323 = vpop.f32.mrb[0].mxu0
    %v324 = vadd.f32 %v127, %v323
    %v325 = vpop.f32.mrb[0].mxu0
    %v326 = vadd.f32 %v123, %v325
    %v327 = vpop.f32.mrb[0].mxu0
    %v328 = vadd.f32 %v127, %v327
    %329 = vmatprep.mubr.bf16.mxu0 0
    %330 = vmatmul.mubr.bf16.gmra.mrb[0].mxu0 %v152
    %v331 = vpop.f32.mrb[0].mxu0
    %v332 = vadd.f32 %v123, %v331
    %v333 = vpop.f32.mrb[0].mxu0
    %v334 = vadd.f32 %v127, %v333
    %v335 = vpop.f32.mrb[0].mxu0
    %v336 = vadd.f32 %v123, %v335
    %v337 = vpop.f32.mrb[0].mxu0
    %v338 = vadd.f32 %v127, %v337
    %339 = vmatprep.mubr.bf16.mxu0 0
    %340 = vmatmul.mubr.bf16.gmra.mrb[0].mxu0 %v153
    %v341 = vpop.f32.mrb[0].mxu0
    %v342 = vadd.f32 %v123, %v341
    %v343 = vpop.f32.mrb[0].mxu0
    %v344 = vadd.f32 %v127, %v343
    %v345 = vpop.f32.mrb[0].mxu0
    %v346 = vadd.f32 %v123, %v345
    %v347 = vpop.f32.mrb[0].mxu0
    %v348 = vadd.f32 %v127, %v347
    %349 = vmatprep.mubr.bf16.mxu0 0
    %350 = vmatmul.mubr.bf16.gmra.mrb[0].mxu0 %v154
    %v351 = vpop.f32.mrb[0].mxu0
    %v352 = vadd.f32 %v123, %v351
    %v353 = vpop.f32.mrb[0].mxu0
    %v354 = vadd.f32 %v127, %v353
    %v355 = vpop.f32.mrb[0].mxu0
    %v356 = vadd.f32 %v123, %v355
    %v357 = vpop.f32.mrb[0].mxu0
    %v358 = vadd.f32 %v127, %v357
    %359 = vdwg.mxu0
    %360 = vmatprep.subr.bf16.mxu0 0
    %361 = vmatpush1.bf16.msra.mxu0 %v241
    %362 = vmatprep.subr.bf16.mxu0 0
    %363 = vmatpush1.bf16.msra.mxu0 %v244
    %364 = vmatprep.subr.bf16.mxu0 0
    %365 = vmatpush1.bf16.msra.mxu0 %v247
    %366 = vmatprep.subr.bf16.mxu0 0
    %367 = vmatpush1.bf16.msra.mxu0 %v250
    %368 = vmatprep.subr.bf16.mxu0 0
    %369 = vmatpush1.bf16.msra.mxu0 %v253
    %370 = vmatprep.subr.bf16.mxu0 0
    %371 = vmatpush1.bf16.msra.mxu0 %v256
    %372 = vmatprep.subr.bf16.mxu0 0
    %373 = vmatpush1.bf16.msra.mxu0 %v259
    %374 = vmatprep.subr.bf16.mxu0 0
    %375 = vmatpush1.bf16.msra.mxu0 %v262
    %376 = vmatprep.subr.bf16.mxu0 0
    %377 = vmatpush1.bf16.msra.mxu0 0
    %378 = vmatprep.subr.bf16.mxu0 0
    %379 = vmatpush1.bf16.msra.mxu0 0
    %380 = vmatprep.subr.bf16.mxu0 0
    %381 = vmatpush1.bf16.msra.mxu0 0
    %382 = vmatprep.subr.bf16.mxu0 0
    %383 = vmatpush1.bf16.msra.mxu0 0
    %384 = vmatprep.subr.bf16.mxu0 0
    %385 = vmatpush1.bf16.msra.mxu0 0
    %386 = vmatprep.subr.bf16.mxu0 0
    %387 = vmatpush1.bf16.msra.mxu0 0
    %388 = vmatprep.subr.bf16.mxu0 0
    %389 = vmatpush1.bf16.msra.mxu0 0
    %390 = vmatprep.subr.bf16.mxu0 0
    %391 = vmatpush1.bf16.msra.mxu0 0
    %392 = vmatprep.mubr.bf16.mxu0 0
    %393 = vmatmul.mubr.bf16.gmra.mrb[0].mxu0 %v151
    %v394 = vpop.f32.mrb[0].mxu0
    %v395 = vadd.f32 %v131, %v394
    %v396 = vpop.f32.mrb[0].mxu0
    %v397 = vpop.f32.mrb[0].mxu0
    %v398 = vadd.f32 %v131, %v397
    %v399 = vpop.f32.mrb[0].mxu0
    %400 = vmatprep.mubr.bf16.mxu0 0
    %401 = vmatmul.mubr.bf16.gmra.mrb[0].mxu0 %v152
    %v402 = vpop.f32.mrb[0].mxu0
    %v403 = vadd.f32 %v131, %v402
    %v404 = vpop.f32.mrb[0].mxu0
    %v405 = vpop.f32.mrb[0].mxu0
    %v406 = vadd.f32 %v131, %v405
    %v407 = vpop.f32.mrb[0].mxu0
    %408 = vmatprep.mubr.bf16.mxu0 0
    %409 = vmatmul.mubr.bf16.gmra.mrb[0].mxu0 %v153
    %v410 = vpop.f32.mrb[0].mxu0
    %v411 = vadd.f32 %v131, %v410
    %v412 = vpop.f32.mrb[0].mxu0
    %v413 = vpop.f32.mrb[0].mxu0
    %v414 = vadd.f32 %v131, %v413
    %v415 = vpop.f32.mrb[0].mxu0
    %416 = vmatprep.mubr.bf16.mxu0 0
    %417 = vmatmul.mubr.bf16.gmra.mrb[0].mxu0 %v154
    %v418 = vpop.f32.mrb[0].mxu0
    %v419 = vadd.f32 %v131, %v418
    %v420 = vpop.f32.mrb[0].mxu0
    %v421 = vpop.f32.mrb[0].mxu0
    %v422 = vadd.f32 %v131, %v421
    %v423 = vpop.f32.mrb[0].mxu0
    %424 = vdwg.mxu0
    %425 = vst [vmem:[#allocation2] sm:$0xff] %v322
    %426 = vst [vmem:[#allocation2 + $0x8] sm:$0xff] %v324
    %427 = vst [vmem:[#allocation2 + $0x10] sm:$0xff] %v395
    %428 = vst [vmem:[#allocation2 + $0x18] sm:$0xff] %v326
    %429 = vst [vmem:[#allocation2 + $0x20] sm:$0xff] %v328
    %430 = vst [vmem:[#allocation2 + $0x28] sm:$0xff] %v398
    %431 = vst [vmem:[#allocation2 + $0x30] sm:$0xff] %v332
    %432 = vst [vmem:[#allocation2 + $0x38] sm:$0xff] %v334
    %433 = vst [vmem:[#allocation2 + $0x40] sm:$0xff] %v403
    %434 = vst [vmem:[#allocation2 + $0x48] sm:$0xff] %v336
    %435 = vst [vmem:[#allocation2 + $0x50] sm:$0xff] %v338
    %436 = vst [vmem:[#allocation2 + $0x58] sm:$0xff] %v406
    %437 = vst [vmem:[#allocation2 + $0x60] sm:$0xff] %v342
    %438 = vst [vmem:[#allocation2 + $0x68] sm:$0xff] %v344
    %439 = vst [vmem:[#allocation2 + $0x70] sm:$0xff] %v411
    %440 = vst [vmem:[#allocation2 + $0x78] sm:$0xff] %v346
    %441 = vst [vmem:[#allocation2 + $0x80] sm:$0xff] %v348
    %442 = vst [vmem:[#allocation2 + $0x88] sm:$0xff] %v414
    %443 = vst [vmem:[#allocation2 + $0x90] sm:$0xff] %v352
    %444 = vst [vmem:[#allocation2 + $0x98] sm:$0xff] %v354
    %445 = vst [vmem:[#allocation2 + $0xa0] sm:$0xff] %v419
    %446 = vst [vmem:[#allocation2 + $0xa8] sm:$0xff] %v356
    %447 = vst [vmem:[#allocation2 + $0xb0] sm:$0xff] %v358
    %448 = vst [vmem:[#allocation2 + $0xb8] sm:$0xff] %v422
    %v449 = vld [vmem:[#allocation9] sm:$0xff]
    %v450 = vld [vmem:[#allocation9 + $0x8] sm:$0xf]
    %v451 = vld [vmem:[#allocation9 + $0xc] sm:$0xff]
    %v452 = vld [vmem:[#allocation9 + $0x14] sm:$0xf]
    %v453 = vld [vmem:[#allocation9 + $0x18] sm:$0xff]
    %v454 = vld [vmem:[#allocation9 + $0x20] sm:$0xf]
    %v455 = vld [vmem:[#allocation9 + $0x24] sm:$0xff]
    %v456 = vld [vmem:[#allocation9 + $0x2c] sm:$0xf]
    %v457 = vld [vmem:[#allocation9 + $0x30] sm:$0xff]
    %v458 = vld [vmem:[#allocation9 + $0x38] sm:$0xf]
    %v459 = vld [vmem:[#allocation9 + $0x3c] sm:$0xff]
    %v460 = vld [vmem:[#allocation9 + $0x44] sm:$0xf]
    %v461 = vld [vmem:[#allocation9 + $0x48] sm:$0xff]
    %v462 = vld [vmem:[#allocation9 + $0x50] sm:$0xf]
    %v463 = vld [vmem:[#allocation9 + $0x54] sm:$0xff]
    %v464 = vld [vmem:[#allocation9 + $0x5c] sm:$0xf]
    %v465 = vld [vmem:[#allocation9 + $0x60] sm:$0xff]
    %v466 = vld [vmem:[#allocation9 + $0x68] sm:$0xf]
    %v467 = vld [vmem:[#allocation9 + $0x6c] sm:$0xff]
    %v468 = vld [vmem:[#allocation9 + $0x74] sm:$0xf]
    %v469 = vld [vmem:[#allocation9 + $0x78] sm:$0xff]
    %v470 = vld [vmem:[#allocation9 + $0x80] sm:$0xf]
    %v471 = vld [vmem:[#allocation9 + $0x84] sm:$0xff]
    %v472 = vld [vmem:[#allocation9 + $0x8c] sm:$0xf]
    %v473 = vld [vmem:[#allocation9 + $0x90] sm:$0xff]
    %v474 = vld [vmem:[#allocation9 + $0x98] sm:$0xf]
    %v475 = vld [vmem:[#allocation9 + $0x9c] sm:$0xff]
    %v476 = vld [vmem:[#allocation9 + $0xa4] sm:$0xf]
    %v477 = vld [vmem:[#allocation9 + $0xa8] sm:$0xff]
    %v478 = vld [vmem:[#allocation9 + $0xb0] sm:$0xf]
    %v479 = vld [vmem:[#allocation9 + $0xb4] sm:$0xff]
    %v480 = vld [vmem:[#allocation9 + $0xbc] sm:$0xf]
    %v481 = vld [vmem:[%s5] sm:$0x1]
    %v483 = vlaneseq
    %v484 = vshrl.u32 %v483, 7
    %v485 = vsub.s32 0, %v484
    %v486 = vrot.slane %v481, %v485
    %v488 = vld [vmem:[#allocation6] sm:$0xff]
    %v489 = vld [vmem:[#allocation2] sm:$0xff]
    %v490 = vld [vmem:[#allocation2 + $0x8] sm:$0xff]
    %v491 = vld [vmem:[#allocation2 + $0x10] sm:$0xff]
    %v492 = vpack.c.bf16 %v488, %v488
    %v525 = vunpack.c.l.b16 %v449
    %v526 = vunpack.c.h.b16 %v449
    %v527 = vunpack.c.l.b16 %v450
    %v528 = vunpack.c.l.b16 %v451
    %v529 = vunpack.c.h.b16 %v451
    %v530 = vunpack.c.l.b16 %v452
    %v531 = vunpack.c.l.b16 %v453
    %v532 = vunpack.c.h.b16 %v453
    %v533 = vunpack.c.l.b16 %v454
    %v534 = vunpack.c.l.b16 %v455
    %v535 = vunpack.c.h.b16 %v455
    %v536 = vunpack.c.l.b16 %v456
    %v537 = vunpack.c.l.b16 %v457
    %v538 = vunpack.c.h.b16 %v457
    %v539 = vunpack.c.l.b16 %v458
    %v540 = vunpack.c.l.b16 %v459
    %v541 = vunpack.c.h.b16 %v459
    %v542 = vunpack.c.l.b16 %v460
    %v543 = vunpack.c.l.b16 %v461
    %v544 = vunpack.c.h.b16 %v461
    %v545 = vunpack.c.l.b16 %v462
    %v546 = vunpack.c.l.b16 %v463
    %v547 = vunpack.c.h.b16 %v463
    %v548 = vunpack.c.l.b16 %v464
    %v549 = vunpack.c.l.b16 %v465
    %v550 = vunpack.c.h.b16 %v465
    %v551 = vunpack.c.l.b16 %v466
    %v552 = vunpack.c.l.b16 %v467
    %v553 = vunpack.c.h.b16 %v467
    %v554 = vunpack.c.l.b16 %v468
    %v555 = vunpack.c.l.b16 %v469
    %v556 = vunpack.c.h.b16 %v469
    %v557 = vunpack.c.l.b16 %v470
    %v558 = vunpack.c.l.b16 %v471
    %v559 = vunpack.c.h.b16 %v471
    %v560 = vunpack.c.l.b16 %v472
    %v561 = vunpack.c.l.b16 %v473
    %v562 = vunpack.c.h.b16 %v473
    %v563 = vunpack.c.l.b16 %v474
    %v564 = vunpack.c.l.b16 %v475
    %v565 = vunpack.c.h.b16 %v475
    %v566 = vunpack.c.l.b16 %v476
    %v567 = vunpack.c.l.b16 %v477
    %v568 = vunpack.c.h.b16 %v477
    %v569 = vunpack.c.l.b16 %v478
    %v570 = vunpack.c.l.b16 %v479
    %v571 = vunpack.c.h.b16 %v479
    %v572 = vunpack.c.l.b16 %v480
    %v573 = vpack.c.b16 %v528, %v525
    %v574 = vpack.c.b16 %v529, %v526
    %v575 = vpack.c.b16 %v530, %v527
    %v576 = vpack.c.b16 %v534, %v531
    %v577 = vpack.c.b16 %v535, %v532
    %v578 = vpack.c.b16 %v536, %v533
    %v579 = vpack.c.b16 %v540, %v537
    %v580 = vpack.c.b16 %v541, %v538
    %v581 = vpack.c.b16 %v542, %v539
    %v582 = vpack.c.b16 %v546, %v543
    %v583 = vpack.c.b16 %v547, %v544
    %v584 = vpack.c.b16 %v548, %v545
    %v585 = vpack.c.b16 %v552, %v549
    %v586 = vpack.c.b16 %v553, %v550
    %v587 = vpack.c.b16 %v554, %v551
    %v588 = vpack.c.b16 %v558, %v555
    %v589 = vpack.c.b16 %v559, %v556
    %v590 = vpack.c.b16 %v560, %v557
    %v591 = vpack.c.b16 %v564, %v561
    %v592 = vpack.c.b16 %v565, %v562
    %v593 = vpack.c.b16 %v566, %v563
    %v594 = vpack.c.b16 %v570, %v567
    %v595 = vpack.c.b16 %v571, %v568
    %v596 = vpack.c.b16 %v572, %v569
    %621 = vmatprep.subr.bf16.mxu0 %v574
    %622 = vmatpush1.bf16.msra.mxu0 %v573
    %623 = vmatprep.subr.bf16.mxu0 %v577
    %624 = vmatpush1.bf16.msra.mxu0 %v576
    %625 = vmatprep.subr.bf16.mxu0 %v580
    %626 = vmatpush1.bf16.msra.mxu0 %v579
    %627 = vmatprep.subr.bf16.mxu0 %v583
    %628 = vmatpush1.bf16.msra.mxu0 %v582
    %629 = vmatprep.subr.bf16.mxu0 %v586
    %630 = vmatpush1.bf16.msra.mxu0 %v585
    %631 = vmatprep.subr.bf16.mxu0 %v589
    %632 = vmatpush1.bf16.msra.mxu0 %v588
    %633 = vmatprep.subr.bf16.mxu0 %v592
    %634 = vmatpush1.bf16.msra.mxu0 %v591
    %635 = vmatprep.subr.bf16.mxu0 %v595
    %636 = vmatpush1.bf16.msra.mxu0 %v594
    %637 = vmatprep.subr.bf16.mxu0 0
    %638 = vmatpush1.bf16.msra.mxu0 0
    %639 = vmatprep.subr.bf16.mxu0 0
    %640 = vmatpush1.bf16.msra.mxu0 0
    %641 = vmatprep.subr.bf16.mxu0 0
    %642 = vmatpush1.bf16.msra.mxu0 0
    %643 = vmatprep.subr.bf16.mxu0 0
    %644 = vmatpush1.bf16.msra.mxu0 0
    %645 = vmatprep.subr.bf16.mxu0 0
    %646 = vmatpush1.bf16.msra.mxu0 0
    %647 = vmatprep.subr.bf16.mxu0 0
    %648 = vmatpush1.bf16.msra.mxu0 0
    %649 = vmatprep.subr.bf16.mxu0 0
    %650 = vmatpush1.bf16.msra.mxu0 0
    %651 = vmatprep.subr.bf16.mxu0 0
    %652 = vmatpush1.bf16.msra.mxu0 0
    %653 = vmatprep.mubr.bf16.mxu0 0
    %654 = vmatmul.mubr.bf16.gmra.mrb[0].mxu0 %v492
    %v655 = vpop.f32.mrb[0].mxu0
    %v656 = vadd.f32 0.0, %v655
    %v657 = vpop.f32.mrb[0].mxu0
    %v658 = vadd.f32 0.0, %v657
    %v659 = vpop.f32.mrb[0].mxu0
    %v660 = vpop.f32.mrb[0].mxu0
    %661 = vdwg.mxu0
    %662 = vmatprep.subr.bf16.mxu0 0
    %663 = vmatpush1.bf16.msra.mxu0 %v575
    %664 = vmatprep.subr.bf16.mxu0 0
    %665 = vmatpush1.bf16.msra.mxu0 %v578
    %666 = vmatprep.subr.bf16.mxu0 0
    %667 = vmatpush1.bf16.msra.mxu0 %v581
    %668 = vmatprep.subr.bf16.mxu0 0
    %669 = vmatpush1.bf16.msra.mxu0 %v584
    %670 = vmatprep.subr.bf16.mxu0 0
    %671 = vmatpush1.bf16.msra.mxu0 %v587
    %672 = vmatprep.subr.bf16.mxu0 0
    %673 = vmatpush1.bf16.msra.mxu0 %v590
    %674 = vmatprep.subr.bf16.mxu0 0
    %675 = vmatpush1.bf16.msra.mxu0 %v593
    %676 = vmatprep.subr.bf16.mxu0 0
    %677 = vmatpush1.bf16.msra.mxu0 %v596
    %678 = vmatprep.subr.bf16.mxu0 0
    %679 = vmatpush1.bf16.msra.mxu0 0
    %680 = vmatprep.subr.bf16.mxu0 0
    %681 = vmatpush1.bf16.msra.mxu0 0
    %682 = vmatprep.subr.bf16.mxu0 0
    %683 = vmatpush1.bf16.msra.mxu0 0
    %684 = vmatprep.subr.bf16.mxu0 0
    %685 = vmatpush1.bf16.msra.mxu0 0
    %686 = vmatprep.subr.bf16.mxu0 0
    %687 = vmatpush1.bf16.msra.mxu0 0
    %688 = vmatprep.subr.bf16.mxu0 0
    %689 = vmatpush1.bf16.msra.mxu0 0
    %690 = vmatprep.subr.bf16.mxu0 0
    %691 = vmatpush1.bf16.msra.mxu0 0
    %692 = vmatprep.subr.bf16.mxu0 0
    %693 = vmatpush1.bf16.msra.mxu0 0
    %694 = vmatprep.mubr.bf16.mxu0 0
    %695 = vmatmul.mubr.bf16.gmra.mrb[0].mxu0 %v492
    %v696 = vpop.f32.mrb[0].mxu0
    %v697 = vadd.f32 0.0, %v696
    %v698 = vpop.f32.mrb[0].mxu0
    %v699 = vpop.f32.mrb[0].mxu0
    %v700 = vpop.f32.mrb[0].mxu0
    %701 = vdwg.mxu0
    %v702 = vadd.f32 %v489, %v656
    %v703 = vxor.u32 %v702, 2147483648
    %v704 = vmul.f32 %v703, 1.442695
    %v705 = vpow.pop %v704
    %v706 = vadd.f32 %v705, 1.0
    %v707 = vrcp.pop %v706
    %v708 = vmul.f32 1.0, %v707
    %v709 = vadd.f32 %v490, %v658
    %v710 = vxor.u32 %v709, 2147483648
    %v711 = vmul.f32 %v710, 1.442695
    %v712 = vpow.pop %v711
    %v713 = vadd.f32 %v712, 1.0
    %v714 = vrcp.pop %v713
    %v715 = vmul.f32 1.0, %v714
    %v716 = vadd.f32 %v697, %v486
    %v717 = vmul.f32 %v708, %v716
    %v718 = vadd.f32 %v491, %v717
    %v719 = vtanh.pop %v718
    %v720 = vsub.f32 1.0, %v715
    %v721 = vmul.f32 %v720, %v719
    %v722 = vmul.f32 %v715, %v488
    %v723 = vadd.f32 %v721, %v722
    %s724 = scalar_lea.vmem [#allocation2], 24
    %v725 = vld [vmem:[%s724] sm:$0xff]
    %v726 = vld [vmem:[%s724 + $0x8] sm:$0xff]
    %v727 = vld [vmem:[%s724 + $0x10] sm:$0xff]
    %v728 = vpack.c.bf16 %v723, %v723
    %729 = vmatprep.subr.bf16.mxu0 %v574
    %730 = vmatpush1.bf16.msra.mxu0 %v573
    %731 = vmatprep.subr.bf16.mxu0 %v577
    %732 = vmatpush1.bf16.msra.mxu0 %v576
    %733 = vmatprep.subr.bf16.mxu0 %v580
    %734 = vmatpush1.bf16.msra.mxu0 %v579
    %735 = vmatprep.subr.bf16.mxu0 %v583
    %736 = vmatpush1.bf16.msra.mxu0 %v582
    %737 = vmatprep.subr.bf16.mxu0 %v586
    %738 = vmatpush1.bf16.msra.mxu0 %v585
    %739 = vmatprep.subr.bf16.mxu0 %v589
    %740 = vmatpush1.bf16.msra.mxu0 %v588
    %741 = vmatprep.subr.bf16.mxu0 %v592
    %742 = vmatpush1.bf16.msra.mxu0 %v591
    %743 = vmatprep.subr.bf16.mxu0 %v595
    %744 = vmatpush1.bf16.msra.mxu0 %v594
    %745 = vmatprep.subr.bf16.mxu0 0
    %746 = vmatpush1.bf16.msra.mxu0 0
    %747 = vmatprep.subr.bf16.mxu0 0
    %748 = vmatpush1.bf16.msra.mxu0 0
    %749 = vmatprep.subr.bf16.mxu0 0
    %750 = vmatpush1.bf16.msra.mxu0 0
    %751 = vmatprep.subr.bf16.mxu0 0
    %752 = vmatpush1.bf16.msra.mxu0 0
    %753 = vmatprep.subr.bf16.mxu0 0
    %754 = vmatpush1.bf16.msra.mxu0 0
    %755 = vmatprep.subr.bf16.mxu0 0
    %756 = vmatpush1.bf16.msra.mxu0 0
    %757 = vmatprep.subr.bf16.mxu0 0
    %758 = vmatpush1.bf16.msra.mxu0 0
    %759 = vmatprep.subr.bf16.mxu0 0
    %760 = vmatpush1.bf16.msra.mxu0 0
    %761 = vmatprep.mubr.bf16.mxu0 0
    %762 = vmatmul.mubr.bf16.gmra.mrb[0].mxu0 %v728
    %v763 = vpop.f32.mrb[0].mxu0
    %v764 = vadd.f32 0.0, %v763
    %v765 = vpop.f32.mrb[0].mxu0
    %v766 = vadd.f32 0.0, %v765
    %v767 = vpop.f32.mrb[0].mxu0
    %v768 = vpop.f32.mrb[0].mxu0
    %769 = vdwg.mxu0
    %770 = vmatprep.subr.bf16.mxu0 0
    %771 = vmatpush1.bf16.msra.mxu0 %v575
    %772 = vmatprep.subr.bf16.mxu0 0
    %773 = vmatpush1.bf16.msra.mxu0 %v578
    %774 = vmatprep.subr.bf16.mxu0 0
    %775 = vmatpush1.bf16.msra.mxu0 %v581
    %776 = vmatprep.subr.bf16.mxu0 0
    %777 = vmatpush1.bf16.msra.mxu0 %v584
    %778 = vmatprep.subr.bf16.mxu0 0
    %779 = vmatpush1.bf16.msra.mxu0 %v587
    %780 = vmatprep.subr.bf16.mxu0 0
    %781 = vmatpush1.bf16.msra.mxu0 %v590
    %782 = vmatprep.subr.bf16.mxu0 0
    %783 = vmatpush1.bf16.msra.mxu0 %v593
    %784 = vmatprep.subr.bf16.mxu0 0
    %785 = vmatpush1.bf16.msra.mxu0 %v596
    %786 = vmatprep.subr.bf16.mxu0 0
    %787 = vmatpush1.bf16.msra.mxu0 0
    %788 = vmatprep.subr.bf16.mxu0 0
    %789 = vmatpush1.bf16.msra.mxu0 0
    %790 = vmatprep.subr.bf16.mxu0 0
    %791 = vmatpush1.bf16.msra.mxu0 0
    %792 = vmatprep.subr.bf16.mxu0 0
    %793 = vmatpush1.bf16.msra.mxu0 0
    %794 = vmatprep.subr.bf16.mxu0 0
    %795 = vmatpush1.bf16.msra.mxu0 0
    %796 = vmatprep.subr.bf16.mxu0 0
    %797 = vmatpush1.bf16.msra.mxu0 0
    %798 = vmatprep.subr.bf16.mxu0 0
    %799 = vmatpush1.bf16.msra.mxu0 0
    %800 = vmatprep.subr.bf16.mxu0 0
    %801 = vmatpush1.bf16.msra.mxu0 0
    %802 = vmatprep.mubr.bf16.mxu0 0
    %803 = vmatmul.mubr.bf16.gmra.mrb[0].mxu0 %v728
    %v804 = vpop.f32.mrb[0].mxu0
    %v805 = vadd.f32 0.0, %v804
    %v806 = vpop.f32.mrb[0].mxu0
    %v807 = vpop.f32.mrb[0].mxu0
    %v808 = vpop.f32.mrb[0].mxu0
    %809 = vdwg.mxu0
    %v810 = vadd.f32 %v725, %v764
    %v811 = vxor.u32 %v810, 2147483648
    %v812 = vmul.f32 %v811, 1.442695
    %v813 = vpow.pop %v812
    %v814 = vadd.f32 %v813, 1.0
    %v815 = vrcp.pop %v814
    %v816 = vmul.f32 1.0, %v815
    %v817 = vadd.f32 %v726, %v766
    %v818 = vxor.u32 %v817, 2147483648
    %v819 = vmul.f32 %v818, 1.442695
    %v820 = vpow.pop %v819
    %v821 = vadd.f32 %v820, 1.0
    %v822 = vrcp.pop %v821
    %v823 = vmul.f32 1.0, %v822
    %v824 = vadd.f32 %v805, %v486
    %v825 = vmul.f32 %v816, %v824
    %v826 = vadd.f32 %v727, %v825
    %v827 = vtanh.pop %v826
    %v828 = vsub.f32 1.0, %v823
    %v829 = vmul.f32 %v828, %v827
    %v830 = vmul.f32 %v823, %v723
    %v831 = vadd.f32 %v829, %v830
    %s832 = scalar_lea.vmem [#allocation2], 48
    %v833 = vld [vmem:[%s832] sm:$0xff]
    %v834 = vld [vmem:[%s832 + $0x8] sm:$0xff]
    %v835 = vld [vmem:[%s832 + $0x10] sm:$0xff]
    %v836 = vpack.c.bf16 %v831, %v831
    %837 = vmatprep.subr.bf16.mxu0 %v574
    %838 = vmatpush1.bf16.msra.mxu0 %v573
    %839 = vmatprep.subr.bf16.mxu0 %v577
    %840 = vmatpush1.bf16.msra.mxu0 %v576
    %841 = vmatprep.subr.bf16.mxu0 %v580
    %842 = vmatpush1.bf16.msra.mxu0 %v579
    %843 = vmatprep.subr.bf16.mxu0 %v583
    %844 = vmatpush1.bf16.msra.mxu0 %v582
    %845 = vmatprep.subr.bf16.mxu0 %v586
    %846 = vmatpush1.bf16.msra.mxu0 %v585
    %847 = vmatprep.subr.bf16.mxu0 %v589
    %848 = vmatpush1.bf16.msra.mxu0 %v588
    %849 = vmatprep.subr.bf16.mxu0 %v592
    %850 = vmatpush1.bf16.msra.mxu0 %v591
    %851 = vmatprep.subr.bf16.mxu0 %v595
    %852 = vmatpush1.bf16.msra.mxu0 %v594
    %853 = vmatprep.subr.bf16.mxu0 0
    %854 = vmatpush1.bf16.msra.mxu0 0
    %855 = vmatprep.subr.bf16.mxu0 0
    %856 = vmatpush1.bf16.msra.mxu0 0
    %857 = vmatprep.subr.bf16.mxu0 0
    %858 = vmatpush1.bf16.msra.mxu0 0
    %859 = vmatprep.subr.bf16.mxu0 0
    %860 = vmatpush1.bf16.msra.mxu0 0
    %861 = vmatprep.subr.bf16.mxu0 0
    %862 = vmatpush1.bf16.msra.mxu0 0
    %863 = vmatprep.subr.bf16.mxu0 0
    %864 = vmatpush1.bf16.msra.mxu0 0
    %865 = vmatprep.subr.bf16.mxu0 0
    %866 = vmatpush1.bf16.msra.mxu0 0
    %867 = vmatprep.subr.bf16.mxu0 0
    %868 = vmatpush1.bf16.msra.mxu0 0
    %869 = vmatprep.mubr.bf16.mxu0 0
    %870 = vmatmul.mubr.bf16.gmra.mrb[0].mxu0 %v836
    %v871 = vpop.f32.mrb[0].mxu0
    %v872 = vadd.f32 0.0, %v871
    %v873 = vpop.f32.mrb[0].mxu0
    %v874 = vadd.f32 0.0, %v873
    %v875 = vpop.f32.mrb[0].mxu0
    %v876 = vpop.f32.mrb[0].mxu0
    %877 = vdwg.mxu0
    %878 = vmatprep.subr.bf16.mxu0 0
    %879 = vmatpush1.bf16.msra.mxu0 %v575
    %880 = vmatprep.subr.bf16.mxu0 0
    %881 = vmatpush1.bf16.msra.mxu0 %v578
    %882 = vmatprep.subr.bf16.mxu0 0
    %883 = vmatpush1.bf16.msra.mxu0 %v581
    %884 = vmatprep.subr.bf16.mxu0 0
    %885 = vmatpush1.bf16.msra.mxu0 %v584
    %886 = vmatprep.subr.bf16.mxu0 0
    %887 = vmatpush1.bf16.msra.mxu0 %v587
    %888 = vmatprep.subr.bf16.mxu0 0
    %889 = vmatpush1.bf16.msra.mxu0 %v590
    %890 = vmatprep.subr.bf16.mxu0 0
    %891 = vmatpush1.bf16.msra.mxu0 %v593
    %892 = vmatprep.subr.bf16.mxu0 0
    %893 = vmatpush1.bf16.msra.mxu0 %v596
    %894 = vmatprep.subr.bf16.mxu0 0
    %895 = vmatpush1.bf16.msra.mxu0 0
    %896 = vmatprep.subr.bf16.mxu0 0
    %897 = vmatpush1.bf16.msra.mxu0 0
    %898 = vmatprep.subr.bf16.mxu0 0
    %899 = vmatpush1.bf16.msra.mxu0 0
    %900 = vmatprep.subr.bf16.mxu0 0
    %901 = vmatpush1.bf16.msra.mxu0 0
    %902 = vmatprep.subr.bf16.mxu0 0
    %903 = vmatpush1.bf16.msra.mxu0 0
    %904 = vmatprep.subr.bf16.mxu0 0
    %905 = vmatpush1.bf16.msra.mxu0 0
    %906 = vmatprep.subr.bf16.mxu0 0
    %907 = vmatpush1.bf16.msra.mxu0 0
    %908 = vmatprep.subr.bf16.mxu0 0
    %909 = vmatpush1.bf16.msra.mxu0 0
    %910 = vmatprep.mubr.bf16.mxu0 0
    %911 = vmatmul.mubr.bf16.gmra.mrb[0].mxu0 %v836
    %v912 = vpop.f32.mrb[0].mxu0
    %v913 = vadd.f32 0.0, %v912
    %v914 = vpop.f32.mrb[0].mxu0
    %v915 = vpop.f32.mrb[0].mxu0
    %v916 = vpop.f32.mrb[0].mxu0
    %917 = vdwg.mxu0
    %v918 = vadd.f32 %v833, %v872
    %v919 = vxor.u32 %v918, 2147483648
    %v920 = vmul.f32 %v919, 1.442695
    %v921 = vpow.pop %v920
    %v922 = vadd.f32 %v921, 1.0
    %v923 = vrcp.pop %v922
    %v924 = vmul.f32 1.0, %v923
    %v925 = vadd.f32 %v834, %v874
    %v926 = vxor.u32 %v925, 2147483648
    %v927 = vmul.f32 %v926, 1.442695
    %v928 = vpow.pop %v927
    %v929 = vadd.f32 %v928, 1.0
    %v930 = vrcp.pop %v929
    %v931 = vmul.f32 1.0, %v930
    %v932 = vadd.f32 %v913, %v486
    %v933 = vmul.f32 %v924, %v932
    %v934 = vadd.f32 %v835, %v933
    %v935 = vtanh.pop %v934
    %v936 = vsub.f32 1.0, %v931
    %v937 = vmul.f32 %v936, %v935
    %v938 = vmul.f32 %v931, %v831
    %v939 = vadd.f32 %v937, %v938
    %s940 = scalar_lea.vmem [#allocation2], 72
    %v941 = vld [vmem:[%s940] sm:$0xff]
    %v942 = vld [vmem:[%s940 + $0x8] sm:$0xff]
    %v943 = vld [vmem:[%s940 + $0x10] sm:$0xff]
    %v944 = vpack.c.bf16 %v939, %v939
    %945 = vmatprep.subr.bf16.mxu0 %v574
    %946 = vmatpush1.bf16.msra.mxu0 %v573
    %947 = vmatprep.subr.bf16.mxu0 %v577
    %948 = vmatpush1.bf16.msra.mxu0 %v576
    %949 = vmatprep.subr.bf16.mxu0 %v580
    %950 = vmatpush1.bf16.msra.mxu0 %v579
    %951 = vmatprep.subr.bf16.mxu0 %v583
    %952 = vmatpush1.bf16.msra.mxu0 %v582
    %953 = vmatprep.subr.bf16.mxu0 %v586
    %954 = vmatpush1.bf16.msra.mxu0 %v585
    %955 = vmatprep.subr.bf16.mxu0 %v589
    %956 = vmatpush1.bf16.msra.mxu0 %v588
    %957 = vmatprep.subr.bf16.mxu0 %v592
    %958 = vmatpush1.bf16.msra.mxu0 %v591
    %959 = vmatprep.subr.bf16.mxu0 %v595
    %960 = vmatpush1.bf16.msra.mxu0 %v594
    %961 = vmatprep.subr.bf16.mxu0 0
    %962 = vmatpush1.bf16.msra.mxu0 0
    %963 = vmatprep.subr.bf16.mxu0 0
    %964 = vmatpush1.bf16.msra.mxu0 0
    %965 = vmatprep.subr.bf16.mxu0 0
    %966 = vmatpush1.bf16.msra.mxu0 0
    %967 = vmatprep.subr.bf16.mxu0 0
    %968 = vmatpush1.bf16.msra.mxu0 0
    %969 = vmatprep.subr.bf16.mxu0 0
    %970 = vmatpush1.bf16.msra.mxu0 0
    %971 = vmatprep.subr.bf16.mxu0 0
    %972 = vmatpush1.bf16.msra.mxu0 0
    %973 = vmatprep.subr.bf16.mxu0 0
    %974 = vmatpush1.bf16.msra.mxu0 0
    %975 = vmatprep.subr.bf16.mxu0 0
    %976 = vmatpush1.bf16.msra.mxu0 0
    %977 = vmatprep.mubr.bf16.mxu0 0
    %978 = vmatmul.mubr.bf16.gmra.mrb[0].mxu0 %v944
    %v979 = vpop.f32.mrb[0].mxu0
    %v980 = vadd.f32 0.0, %v979
    %v981 = vpop.f32.mrb[0].mxu0
    %v982 = vadd.f32 0.0, %v981
    %v983 = vpop.f32.mrb[0].mxu0
    %v984 = vpop.f32.mrb[0].mxu0
    %985 = vdwg.mxu0
    %986 = vmatprep.subr.bf16.mxu0 0
    %987 = vmatpush1.bf16.msra.mxu0 %v575
    %988 = vmatprep.subr.bf16.mxu0 0
    %989 = vmatpush1.bf16.msra.mxu0 %v578
    %990 = vmatprep.subr.bf16.mxu0 0
    %991 = vmatpush1.bf16.msra.mxu0 %v581
    %992 = vmatprep.subr.bf16.mxu0 0
    %993 = vmatpush1.bf16.msra.mxu0 %v584
    %994 = vmatprep.subr.bf16.mxu0 0
    %995 = vmatpush1.bf16.msra.mxu0 %v587
    %996 = vmatprep.subr.bf16.mxu0 0
    %997 = vmatpush1.bf16.msra.mxu0 %v590
    %998 = vmatprep.subr.bf16.mxu0 0
    %999 = vmatpush1.bf16.msra.mxu0 %v593
    %1000 = vmatprep.subr.bf16.mxu0 0
    %1001 = vmatpush1.bf16.msra.mxu0 %v596
    %1002 = vmatprep.subr.bf16.mxu0 0
    %1003 = vmatpush1.bf16.msra.mxu0 0
    %1004 = vmatprep.subr.bf16.mxu0 0
    %1005 = vmatpush1.bf16.msra.mxu0 0
    %1006 = vmatprep.subr.bf16.mxu0 0
    %1007 = vmatpush1.bf16.msra.mxu0 0
    %1008 = vmatprep.subr.bf16.mxu0 0
    %1009 = vmatpush1.bf16.msra.mxu0 0
    %1010 = vmatprep.subr.bf16.mxu0 0
    %1011 = vmatpush1.bf16.msra.mxu0 0
    %1012 = vmatprep.subr.bf16.mxu0 0
    %1013 = vmatpush1.bf16.msra.mxu0 0
    %1014 = vmatprep.subr.bf16.mxu0 0
    %1015 = vmatpush1.bf16.msra.mxu0 0
    %1016 = vmatprep.subr.bf16.mxu0 0
    %1017 = vmatpush1.bf16.msra.mxu0 0
    %1018 = vmatprep.mubr.bf16.mxu0 0
    %1019 = vmatmul.mubr.bf16.gmra.mrb[0].mxu0 %v944
    %v1020 = vpop.f32.mrb[0].mxu0
    %v1021 = vadd.f32 0.0, %v1020
    %v1022 = vpop.f32.mrb[0].mxu0
    %v1023 = vpop.f32.mrb[0].mxu0
    %v1024 = vpop.f32.mrb[0].mxu0
    %1025 = vdwg.mxu0
    %v1026 = vadd.f32 %v941, %v980
    %v1027 = vxor.u32 %v1026, 2147483648
    %v1028 = vmul.f32 %v1027, 1.442695
    %v1029 = vpow.pop %v1028
    %v1030 = vadd.f32 %v1029, 1.0
    %v1031 = vrcp.pop %v1030
    %v1032 = vmul.f32 1.0, %v1031
    %v1033 = vadd.f32 %v942, %v982
    %v1034 = vxor.u32 %v1033, 2147483648
    %v1035 = vmul.f32 %v1034, 1.442695
    %v1036 = vpow.pop %v1035
    %v1037 = vadd.f32 %v1036, 1.0
    %v1038 = vrcp.pop %v1037
    %v1039 = vmul.f32 1.0, %v1038
    %v1040 = vadd.f32 %v1021, %v486
    %v1041 = vmul.f32 %v1032, %v1040
    %v1042 = vadd.f32 %v943, %v1041
    %v1043 = vtanh.pop %v1042
    %v1044 = vsub.f32 1.0, %v1039
    %v1045 = vmul.f32 %v1044, %v1043
    %v1046 = vmul.f32 %v1039, %v939
    %v1047 = vadd.f32 %v1045, %v1046
    %s1048 = scalar_lea.vmem [#allocation2], 96
    %v1049 = vld [vmem:[%s1048] sm:$0xff]
    %v1050 = vld [vmem:[%s1048 + $0x8] sm:$0xff]
    %v1051 = vld [vmem:[%s1048 + $0x10] sm:$0xff]
    %v1052 = vpack.c.bf16 %v1047, %v1047
    %1053 = vmatprep.subr.bf16.mxu0 %v574
    %1054 = vmatpush1.bf16.msra.mxu0 %v573
    %1055 = vmatprep.subr.bf16.mxu0 %v577
    %1056 = vmatpush1.bf16.msra.mxu0 %v576
    %1057 = vmatprep.subr.bf16.mxu0 %v580
    %1058 = vmatpush1.bf16.msra.mxu0 %v579
    %1059 = vmatprep.subr.bf16.mxu0 %v583
    %1060 = vmatpush1.bf16.msra.mxu0 %v582
    %1061 = vmatprep.subr.bf16.mxu0 %v586
    %1062 = vmatpush1.bf16.msra.mxu0 %v585
    %1063 = vmatprep.subr.bf16.mxu0 %v589
    %1064 = vmatpush1.bf16.msra.mxu0 %v588
    %1065 = vmatprep.subr.bf16.mxu0 %v592
    %1066 = vmatpush1.bf16.msra.mxu0 %v591
    %1067 = vmatprep.subr.bf16.mxu0 %v595
    %1068 = vmatpush1.bf16.msra.mxu0 %v594
    %1069 = vmatprep.subr.bf16.mxu0 0
    %1070 = vmatpush1.bf16.msra.mxu0 0
    %1071 = vmatprep.subr.bf16.mxu0 0
    %1072 = vmatpush1.bf16.msra.mxu0 0
    %1073 = vmatprep.subr.bf16.mxu0 0
    %1074 = vmatpush1.bf16.msra.mxu0 0
    %1075 = vmatprep.subr.bf16.mxu0 0
    %1076 = vmatpush1.bf16.msra.mxu0 0
    %1077 = vmatprep.subr.bf16.mxu0 0
    %1078 = vmatpush1.bf16.msra.mxu0 0
    %1079 = vmatprep.subr.bf16.mxu0 0
    %1080 = vmatpush1.bf16.msra.mxu0 0
    %1081 = vmatprep.subr.bf16.mxu0 0
    %1082 = vmatpush1.bf16.msra.mxu0 0
    %1083 = vmatprep.subr.bf16.mxu0 0
    %1084 = vmatpush1.bf16.msra.mxu0 0
    %1085 = vmatprep.mubr.bf16.mxu0 0
    %1086 = vmatmul.mubr.bf16.gmra.mrb[0].mxu0 %v1052
    %v1087 = vpop.f32.mrb[0].mxu0
    %v1088 = vadd.f32 0.0, %v1087
    %v1089 = vpop.f32.mrb[0].mxu0
    %v1090 = vadd.f32 0.0, %v1089
    %v1091 = vpop.f32.mrb[0].mxu0
    %v1092 = vpop.f32.mrb[0].mxu0
    %1093 = vdwg.mxu0
    %1094 = vmatprep.subr.bf16.mxu0 0
    %1095 = vmatpush1.bf16.msra.mxu0 %v575
    %1096 = vmatprep.subr.bf16.mxu0 0
    %1097 = vmatpush1.bf16.msra.mxu0 %v578
    %1098 = vmatprep.subr.bf16.mxu0 0
    %1099 = vmatpush1.bf16.msra.mxu0 %v581
    %1100 = vmatprep.subr.bf16.mxu0 0
    %1101 = vmatpush1.bf16.msra.mxu0 %v584
    %1102 = vmatprep.subr.bf16.mxu0 0
    %1103 = vmatpush1.bf16.msra.mxu0 %v587
    %1104 = vmatprep.subr.bf16.mxu0 0
    %1105 = vmatpush1.bf16.msra.mxu0 %v590
    %1106 = vmatprep.subr.bf16.mxu0 0
    %1107 = vmatpush1.bf16.msra.mxu0 %v593
    %1108 = vmatprep.subr.bf16.mxu0 0
    %1109 = vmatpush1.bf16.msra.mxu0 %v596
    %1110 = vmatprep.subr.bf16.mxu0 0
    %1111 = vmatpush1.bf16.msra.mxu0 0
    %1112 = vmatprep.subr.bf16.mxu0 0
    %1113 = vmatpush1.bf16.msra.mxu0 0
    %1114 = vmatprep.subr.bf16.mxu0 0
    %1115 = vmatpush1.bf16.msra.mxu0 0
    %1116 = vmatprep.subr.bf16.mxu0 0
    %1117 = vmatpush1.bf16.msra.mxu0 0
    %1118 = vmatprep.subr.bf16.mxu0 0
    %1119 = vmatpush1.bf16.msra.mxu0 0
    %1120 = vmatprep.subr.bf16.mxu0 0
    %1121 = vmatpush1.bf16.msra.mxu0 0
    %1122 = vmatprep.subr.bf16.mxu0 0
    %1123 = vmatpush1.bf16.msra.mxu0 0
    %1124 = vmatprep.subr.bf16.mxu0 0
    %1125 = vmatpush1.bf16.msra.mxu0 0
    %1126 = vmatprep.mubr.bf16.mxu0 0
    %1127 = vmatmul.mubr.bf16.gmra.mrb[0].mxu0 %v1052
    %v1128 = vpop.f32.mrb[0].mxu0
    %v1129 = vadd.f32 0.0, %v1128
    %v1130 = vpop.f32.mrb[0].mxu0
    %v1131 = vpop.f32.mrb[0].mxu0
    %v1132 = vpop.f32.mrb[0].mxu0
    %1133 = vdwg.mxu0
    %v1134 = vadd.f32 %v1049, %v1088
    %v1135 = vxor.u32 %v1134, 2147483648
    %v1136 = vmul.f32 %v1135, 1.442695
    %v1137 = vpow.pop %v1136
    %v1138 = vadd.f32 %v1137, 1.0
    %v1139 = vrcp.pop %v1138
    %v1140 = vmul.f32 1.0, %v1139
    %v1141 = vadd.f32 %v1050, %v1090
    %v1142 = vxor.u32 %v1141, 2147483648
    %v1143 = vmul.f32 %v1142, 1.442695
    %v1144 = vpow.pop %v1143
    %v1145 = vadd.f32 %v1144, 1.0
    %v1146 = vrcp.pop %v1145
    %v1147 = vmul.f32 1.0, %v1146
    %v1148 = vadd.f32 %v1129, %v486
    %v1149 = vmul.f32 %v1140, %v1148
    %v1150 = vadd.f32 %v1051, %v1149
    %v1151 = vtanh.pop %v1150
    %v1152 = vsub.f32 1.0, %v1147
    %v1153 = vmul.f32 %v1152, %v1151
    %v1154 = vmul.f32 %v1147, %v1047
    %v1155 = vadd.f32 %v1153, %v1154
    %s1156 = scalar_lea.vmem [#allocation2], 120
    %v1157 = vld [vmem:[%s1156] sm:$0xff]
    %v1158 = vld [vmem:[%s1156 + $0x8] sm:$0xff]
    %v1159 = vld [vmem:[%s1156 + $0x10] sm:$0xff]
    %v1160 = vpack.c.bf16 %v1155, %v1155
    %1161 = vmatprep.subr.bf16.mxu0 %v574
    %1162 = vmatpush1.bf16.msra.mxu0 %v573
    %1163 = vmatprep.subr.bf16.mxu0 %v577
    %1164 = vmatpush1.bf16.msra.mxu0 %v576
    %1165 = vmatprep.subr.bf16.mxu0 %v580
    %1166 = vmatpush1.bf16.msra.mxu0 %v579
    %1167 = vmatprep.subr.bf16.mxu0 %v583
    %1168 = vmatpush1.bf16.msra.mxu0 %v582
    %1169 = vmatprep.subr.bf16.mxu0 %v586
    %1170 = vmatpush1.bf16.msra.mxu0 %v585
    %1171 = vmatprep.subr.bf16.mxu0 %v589
    %1172 = vmatpush1.bf16.msra.mxu0 %v588
    %1173 = vmatprep.subr.bf16.mxu0 %v592
    %1174 = vmatpush1.bf16.msra.mxu0 %v591
    %1175 = vmatprep.subr.bf16.mxu0 %v595
    %1176 = vmatpush1.bf16.msra.mxu0 %v594
    %1177 = vmatprep.subr.bf16.mxu0 0
    %1178 = vmatpush1.bf16.msra.mxu0 0
    %1179 = vmatprep.subr.bf16.mxu0 0
    %1180 = vmatpush1.bf16.msra.mxu0 0
    %1181 = vmatprep.subr.bf16.mxu0 0
    %1182 = vmatpush1.bf16.msra.mxu0 0
    %1183 = vmatprep.subr.bf16.mxu0 0
    %1184 = vmatpush1.bf16.msra.mxu0 0
    %1185 = vmatprep.subr.bf16.mxu0 0
    %1186 = vmatpush1.bf16.msra.mxu0 0
    %1187 = vmatprep.subr.bf16.mxu0 0
    %1188 = vmatpush1.bf16.msra.mxu0 0
    %1189 = vmatprep.subr.bf16.mxu0 0
    %1190 = vmatpush1.bf16.msra.mxu0 0
    %1191 = vmatprep.subr.bf16.mxu0 0
    %1192 = vmatpush1.bf16.msra.mxu0 0
    %1193 = vmatprep.mubr.bf16.mxu0 0
    %1194 = vmatmul.mubr.bf16.gmra.mrb[0].mxu0 %v1160
    %v1195 = vpop.f32.mrb[0].mxu0
    %v1196 = vadd.f32 0.0, %v1195
    %v1197 = vpop.f32.mrb[0].mxu0
    %v1198 = vadd.f32 0.0, %v1197
    %v1199 = vpop.f32.mrb[0].mxu0
    %v1200 = vpop.f32.mrb[0].mxu0
    %1201 = vdwg.mxu0
    %1202 = vmatprep.subr.bf16.mxu0 0
    %1203 = vmatpush1.bf16.msra.mxu0 %v575
    %1204 = vmatprep.subr.bf16.mxu0 0
    %1205 = vmatpush1.bf16.msra.mxu0 %v578
    %1206 = vmatprep.subr.bf16.mxu0 0
    %1207 = vmatpush1.bf16.msra.mxu0 %v581
    %1208 = vmatprep.subr.bf16.mxu0 0
    %1209 = vmatpush1.bf16.msra.mxu0 %v584
    %1210 = vmatprep.subr.bf16.mxu0 0
    %1211 = vmatpush1.bf16.msra.mxu0 %v587
    %1212 = vmatprep.subr.bf16.mxu0 0
    %1213 = vmatpush1.bf16.msra.mxu0 %v590
    %1214 = vmatprep.subr.bf16.mxu0 0
    %1215 = vmatpush1.bf16.msra.mxu0 %v593
    %1216 = vmatprep.subr.bf16.mxu0 0
    %1217 = vmatpush1.bf16.msra.mxu0 %v596
    %1218 = vmatprep.subr.bf16.mxu0 0
    %1219 = vmatpush1.bf16.msra.mxu0 0
    %1220 = vmatprep.subr.bf16.mxu0 0
    %1221 = vmatpush1.bf16.msra.mxu0 0
    %1222 = vmatprep.subr.bf16.mxu0 0
    %1223 = vmatpush1.bf16.msra.mxu0 0
    %1224 = vmatprep.subr.bf16.mxu0 0
    %1225 = vmatpush1.bf16.msra.mxu0 0
    %1226 = vmatprep.subr.bf16.mxu0 0
    %1227 = vmatpush1.bf16.msra.mxu0 0
    %1228 = vmatprep.subr.bf16.mxu0 0
    %1229 = vmatpush1.bf16.msra.mxu0 0
    %1230 = vmatprep.subr.bf16.mxu0 0
    %1231 = vmatpush1.bf16.msra.mxu0 0
    %1232 = vmatprep.subr.bf16.mxu0 0
    %1233 = vmatpush1.bf16.msra.mxu0 0
    %1234 = vmatprep.mubr.bf16.mxu0 0
    %1235 = vmatmul.mubr.bf16.gmra.mrb[0].mxu0 %v1160
    %v1236 = vpop.f32.mrb[0].mxu0
    %v1237 = vadd.f32 0.0, %v1236
    %v1238 = vpop.f32.mrb[0].mxu0
    %v1239 = vpop.f32.mrb[0].mxu0
    %v1240 = vpop.f32.mrb[0].mxu0
    %1241 = vdwg.mxu0
    %v1242 = vadd.f32 %v1157, %v1196
    %v1243 = vxor.u32 %v1242, 2147483648
    %v1244 = vmul.f32 %v1243, 1.442695
    %v1245 = vpow.pop %v1244
    %v1246 = vadd.f32 %v1245, 1.0
    %v1247 = vrcp.pop %v1246
    %v1248 = vmul.f32 1.0, %v1247
    %v1249 = vadd.f32 %v1158, %v1198
    %v1250 = vxor.u32 %v1249, 2147483648
    %v1251 = vmul.f32 %v1250, 1.442695
    %v1252 = vpow.pop %v1251
    %v1253 = vadd.f32 %v1252, 1.0
    %v1254 = vrcp.pop %v1253
    %v1255 = vmul.f32 1.0, %v1254
    %v1256 = vadd.f32 %v1237, %v486
    %v1257 = vmul.f32 %v1248, %v1256
    %v1258 = vadd.f32 %v1159, %v1257
    %v1259 = vtanh.pop %v1258
    %v1260 = vsub.f32 1.0, %v1255
    %v1261 = vmul.f32 %v1260, %v1259
    %v1262 = vmul.f32 %v1255, %v1155
    %v1263 = vadd.f32 %v1261, %v1262
    %s1264 = scalar_lea.vmem [#allocation2], 144
    %v1265 = vld [vmem:[%s1264] sm:$0xff]
    %v1266 = vld [vmem:[%s1264 + $0x8] sm:$0xff]
    %v1267 = vld [vmem:[%s1264 + $0x10] sm:$0xff]
    %v1268 = vpack.c.bf16 %v1263, %v1263
    %1269 = vmatprep.subr.bf16.mxu0 %v574
    %1270 = vmatpush1.bf16.msra.mxu0 %v573
    %1271 = vmatprep.subr.bf16.mxu0 %v577
    %1272 = vmatpush1.bf16.msra.mxu0 %v576
    %1273 = vmatprep.subr.bf16.mxu0 %v580
    %1274 = vmatpush1.bf16.msra.mxu0 %v579
    %1275 = vmatprep.subr.bf16.mxu0 %v583
    %1276 = vmatpush1.bf16.msra.mxu0 %v582
    %1277 = vmatprep.subr.bf16.mxu0 %v586
    %1278 = vmatpush1.bf16.msra.mxu0 %v585
    %1279 = vmatprep.subr.bf16.mxu0 %v589
    %1280 = vmatpush1.bf16.msra.mxu0 %v588
    %1281 = vmatprep.subr.bf16.mxu0 %v592
    %1282 = vmatpush1.bf16.msra.mxu0 %v591
    %1283 = vmatprep.subr.bf16.mxu0 %v595
    %1284 = vmatpush1.bf16.msra.mxu0 %v594
    %1285 = vmatprep.subr.bf16.mxu0 0
    %1286 = vmatpush1.bf16.msra.mxu0 0
    %1287 = vmatprep.subr.bf16.mxu0 0
    %1288 = vmatpush1.bf16.msra.mxu0 0
    %1289 = vmatprep.subr.bf16.mxu0 0
    %1290 = vmatpush1.bf16.msra.mxu0 0
    %1291 = vmatprep.subr.bf16.mxu0 0
    %1292 = vmatpush1.bf16.msra.mxu0 0
    %1293 = vmatprep.subr.bf16.mxu0 0
    %1294 = vmatpush1.bf16.msra.mxu0 0
    %1295 = vmatprep.subr.bf16.mxu0 0
    %1296 = vmatpush1.bf16.msra.mxu0 0
    %1297 = vmatprep.subr.bf16.mxu0 0
    %1298 = vmatpush1.bf16.msra.mxu0 0
    %1299 = vmatprep.subr.bf16.mxu0 0
    %1300 = vmatpush1.bf16.msra.mxu0 0
    %1301 = vmatprep.mubr.bf16.mxu0 0
    %1302 = vmatmul.mubr.bf16.gmra.mrb[0].mxu0 %v1268
    %v1303 = vpop.f32.mrb[0].mxu0
    %v1304 = vadd.f32 0.0, %v1303
    %v1305 = vpop.f32.mrb[0].mxu0
    %v1306 = vadd.f32 0.0, %v1305
    %v1307 = vpop.f32.mrb[0].mxu0
    %v1308 = vpop.f32.mrb[0].mxu0
    %1309 = vdwg.mxu0
    %1310 = vmatprep.subr.bf16.mxu0 0
    %1311 = vmatpush1.bf16.msra.mxu0 %v575
    %1312 = vmatprep.subr.bf16.mxu0 0
    %1313 = vmatpush1.bf16.msra.mxu0 %v578
    %1314 = vmatprep.subr.bf16.mxu0 0
    %1315 = vmatpush1.bf16.msra.mxu0 %v581
    %1316 = vmatprep.subr.bf16.mxu0 0
    %1317 = vmatpush1.bf16.msra.mxu0 %v584
    %1318 = vmatprep.subr.bf16.mxu0 0
    %1319 = vmatpush1.bf16.msra.mxu0 %v587
    %1320 = vmatprep.subr.bf16.mxu0 0
    %1321 = vmatpush1.bf16.msra.mxu0 %v590
    %1322 = vmatprep.subr.bf16.mxu0 0
    %1323 = vmatpush1.bf16.msra.mxu0 %v593
    %1324 = vmatprep.subr.bf16.mxu0 0
    %1325 = vmatpush1.bf16.msra.mxu0 %v596
    %1326 = vmatprep.subr.bf16.mxu0 0
    %1327 = vmatpush1.bf16.msra.mxu0 0
    %1328 = vmatprep.subr.bf16.mxu0 0
    %1329 = vmatpush1.bf16.msra.mxu0 0
    %1330 = vmatprep.subr.bf16.mxu0 0
    %1331 = vmatpush1.bf16.msra.mxu0 0
    %1332 = vmatprep.subr.bf16.mxu0 0
    %1333 = vmatpush1.bf16.msra.mxu0 0
    %1334 = vmatprep.subr.bf16.mxu0 0
    %1335 = vmatpush1.bf16.msra.mxu0 0
    %1336 = vmatprep.subr.bf16.mxu0 0
    %1337 = vmatpush1.bf16.msra.mxu0 0
    %1338 = vmatprep.subr.bf16.mxu0 0
    %1339 = vmatpush1.bf16.msra.mxu0 0
    %1340 = vmatprep.subr.bf16.mxu0 0
    %1341 = vmatpush1.bf16.msra.mxu0 0
    %1342 = vmatprep.mubr.bf16.mxu0 0
    %1343 = vmatmul.mubr.bf16.gmra.mrb[0].mxu0 %v1268
    %v1344 = vpop.f32.mrb[0].mxu0
    %v1345 = vadd.f32 0.0, %v1344
    %v1346 = vpop.f32.mrb[0].mxu0
    %v1347 = vpop.f32.mrb[0].mxu0
    %v1348 = vpop.f32.mrb[0].mxu0
    %1349 = vdwg.mxu0
    %v1350 = vadd.f32 %v1265, %v1304
    %v1351 = vxor.u32 %v1350, 2147483648
    %v1352 = vmul.f32 %v1351, 1.442695
    %v1353 = vpow.pop %v1352
    %v1354 = vadd.f32 %v1353, 1.0
    %v1355 = vrcp.pop %v1354
    %v1356 = vmul.f32 1.0, %v1355
    %v1357 = vadd.f32 %v1266, %v1306
    %v1358 = vxor.u32 %v1357, 2147483648
    %v1359 = vmul.f32 %v1358, 1.442695
    %v1360 = vpow.pop %v1359
    %v1361 = vadd.f32 %v1360, 1.0
    %v1362 = vrcp.pop %v1361
    %v1363 = vmul.f32 1.0, %v1362
    %v1364 = vadd.f32 %v1345, %v486
    %v1365 = vmul.f32 %v1356, %v1364
    %v1366 = vadd.f32 %v1267, %v1365
    %v1367 = vtanh.pop %v1366
    %v1368 = vsub.f32 1.0, %v1363
    %v1369 = vmul.f32 %v1368, %v1367
    %v1370 = vmul.f32 %v1363, %v1263
    %v1371 = vadd.f32 %v1369, %v1370
    %s1372 = scalar_lea.vmem [#allocation2], 168
    %v1373 = vld [vmem:[%s1372] sm:$0xff]
    %v1374 = vld [vmem:[%s1372 + $0x8] sm:$0xff]
    %v1375 = vld [vmem:[%s1372 + $0x10] sm:$0xff]
    %v1376 = vpack.c.bf16 %v1371, %v1371
    %1377 = vmatprep.subr.bf16.mxu0 %v574
    %1378 = vmatpush1.bf16.msra.mxu0 %v573
    %1379 = vmatprep.subr.bf16.mxu0 %v577
    %1380 = vmatpush1.bf16.msra.mxu0 %v576
    %1381 = vmatprep.subr.bf16.mxu0 %v580
    %1382 = vmatpush1.bf16.msra.mxu0 %v579
    %1383 = vmatprep.subr.bf16.mxu0 %v583
    %1384 = vmatpush1.bf16.msra.mxu0 %v582
    %1385 = vmatprep.subr.bf16.mxu0 %v586
    %1386 = vmatpush1.bf16.msra.mxu0 %v585
    %1387 = vmatprep.subr.bf16.mxu0 %v589
    %1388 = vmatpush1.bf16.msra.mxu0 %v588
    %1389 = vmatprep.subr.bf16.mxu0 %v592
    %1390 = vmatpush1.bf16.msra.mxu0 %v591
    %1391 = vmatprep.subr.bf16.mxu0 %v595
    %1392 = vmatpush1.bf16.msra.mxu0 %v594
    %1393 = vmatprep.subr.bf16.mxu0 0
    %1394 = vmatpush1.bf16.msra.mxu0 0
    %1395 = vmatprep.subr.bf16.mxu0 0
    %1396 = vmatpush1.bf16.msra.mxu0 0
    %1397 = vmatprep.subr.bf16.mxu0 0
    %1398 = vmatpush1.bf16.msra.mxu0 0
    %1399 = vmatprep.subr.bf16.mxu0 0
    %1400 = vmatpush1.bf16.msra.mxu0 0
    %1401 = vmatprep.subr.bf16.mxu0 0
    %1402 = vmatpush1.bf16.msra.mxu0 0
    %1403 = vmatprep.subr.bf16.mxu0 0
    %1404 = vmatpush1.bf16.msra.mxu0 0
    %1405 = vmatprep.subr.bf16.mxu0 0
    %1406 = vmatpush1.bf16.msra.mxu0 0
    %1407 = vmatprep.subr.bf16.mxu0 0
    %1408 = vmatpush1.bf16.msra.mxu0 0
    %1409 = vmatprep.mubr.bf16.mxu0 0
    %1410 = vmatmul.mubr.bf16.gmra.mrb[0].mxu0 %v1376
    %v1411 = vpop.f32.mrb[0].mxu0
    %v1412 = vadd.f32 0.0, %v1411
    %v1413 = vpop.f32.mrb[0].mxu0
    %v1414 = vadd.f32 0.0, %v1413
    %v1415 = vpop.f32.mrb[0].mxu0
    %v1416 = vpop.f32.mrb[0].mxu0
    %1417 = vdwg.mxu0
    %1418 = vmatprep.subr.bf16.mxu0 0
    %1419 = vmatpush1.bf16.msra.mxu0 %v575
    %1420 = vmatprep.subr.bf16.mxu0 0
    %1421 = vmatpush1.bf16.msra.mxu0 %v578
    %1422 = vmatprep.subr.bf16.mxu0 0
    %1423 = vmatpush1.bf16.msra.mxu0 %v581
    %1424 = vmatprep.subr.bf16.mxu0 0
    %1425 = vmatpush1.bf16.msra.mxu0 %v584
    %1426 = vmatprep.subr.bf16.mxu0 0
    %1427 = vmatpush1.bf16.msra.mxu0 %v587
    %1428 = vmatprep.subr.bf16.mxu0 0
    %1429 = vmatpush1.bf16.msra.mxu0 %v590
    %1430 = vmatprep.subr.bf16.mxu0 0
    %1431 = vmatpush1.bf16.msra.mxu0 %v593
    %1432 = vmatprep.subr.bf16.mxu0 0
    %1433 = vmatpush1.bf16.msra.mxu0 %v596
    %1434 = vmatprep.subr.bf16.mxu0 0
    %1435 = vmatpush1.bf16.msra.mxu0 0
    %1436 = vmatprep.subr.bf16.mxu0 0
    %1437 = vmatpush1.bf16.msra.mxu0 0
    %1438 = vmatprep.subr.bf16.mxu0 0
    %1439 = vmatpush1.bf16.msra.mxu0 0
    %1440 = vmatprep.subr.bf16.mxu0 0
    %1441 = vmatpush1.bf16.msra.mxu0 0
    %1442 = vmatprep.subr.bf16.mxu0 0
    %1443 = vmatpush1.bf16.msra.mxu0 0
    %1444 = vmatprep.subr.bf16.mxu0 0
    %1445 = vmatpush1.bf16.msra.mxu0 0
    %1446 = vmatprep.subr.bf16.mxu0 0
    %1447 = vmatpush1.bf16.msra.mxu0 0
    %1448 = vmatprep.subr.bf16.mxu0 0
    %1449 = vmatpush1.bf16.msra.mxu0 0
    %1450 = vmatprep.mubr.bf16.mxu0 0
    %1451 = vmatmul.mubr.bf16.gmra.mrb[0].mxu0 %v1376
    %v1452 = vpop.f32.mrb[0].mxu0
    %v1453 = vadd.f32 0.0, %v1452
    %v1454 = vpop.f32.mrb[0].mxu0
    %v1455 = vpop.f32.mrb[0].mxu0
    %v1456 = vpop.f32.mrb[0].mxu0
    %1457 = vdwg.mxu0
    %v1458 = vadd.f32 %v1373, %v1412
    %v1459 = vxor.u32 %v1458, 2147483648
    %v1460 = vmul.f32 %v1459, 1.442695
    %v1461 = vpow.pop %v1460
    %v1462 = vadd.f32 %v1461, 1.0
    %v1463 = vrcp.pop %v1462
    %v1464 = vmul.f32 1.0, %v1463
    %v1465 = vadd.f32 %v1374, %v1414
    %v1466 = vxor.u32 %v1465, 2147483648
    %v1467 = vmul.f32 %v1466, 1.442695
    %v1468 = vpow.pop %v1467
    %v1469 = vadd.f32 %v1468, 1.0
    %v1470 = vrcp.pop %v1469
    %v1471 = vmul.f32 1.0, %v1470
    %v1472 = vadd.f32 %v1453, %v486
    %v1473 = vmul.f32 %v1464, %v1472
    %v1474 = vadd.f32 %v1375, %v1473
    %v1475 = vtanh.pop %v1474
    %v1476 = vsub.f32 1.0, %v1471
    %v1477 = vmul.f32 %v1476, %v1475
    %v1478 = vmul.f32 %v1471, %v1371
    %v1479 = vadd.f32 %v1477, %v1478
    %v1480 = vmax.f32 %v1479, 0.0
    %1481 = vst [vmem:[#allocation11] sm:$0xff] %v1480
    // Predicated region
    $region42: #{tpu_custom_call.1} parent=1 // pred_check
      _
    $region43: #{tpu_custom_call.1} parent=1 // pred_check_branch
      %1483 = sbr.rel (0) target = $region45
    $region44: #{tpu_custom_call.1} parent=1 // pred_region
      %s1485 = ssub.s32 128, 128
      %1486 = vsyncadd [#allocation5], %s1485
      %s1488 = sshll.u32 [#allocation11], 4
      %s1489 = int_to_ptr.vmem [resolvable:$true] %s1488
      %1491 = dma.vmem_to_hbm [thread:$0]  %s1489, 128, %s6, [#allocation5]
    $region45: #{tpu_custom_call.1} parent=1 // pred_fallthru
      _
    // Predicated region
    $region46: #{tpu_custom_call.1} parent=1 // pred_check
      _
    $region47: #{tpu_custom_call.1} parent=1 // pred_check_branch
      %1493 = sbr.rel (0) target = $region49
    $region48: #{tpu_custom_call.1} parent=1 // pred_region
      %1494 = dma.done [#allocation5], 128
    $region49: #{tpu_custom_call.1} parent=1 // pred_fallthru
      _
    %1495 = vsyncpa [#allocation4], 1
    %1496 = vsyncpa [#allocation7], 1
    %1497 = vsyncpa [#allocation10], 1
    %1498 = vsyncpa [#allocation5], 1

</llo_original>
